<compile_context>
chip_gen: v6e
topology: v6e:2x2x1
jax: 0.10.0
libtpu: 0.0.40
codegen_flags: <defaults>
</compile_context>

<pallas_src>
import math
from functools import partial

import jax
import jax.numpy as jnp
from jax import lax
from jax.experimental import pallas as pl
from jax.experimental.pallas import tpu as pltpu


def _round_up(x, m):
    return ((x + m - 1) // m) * m


# ----------------------------- in-kernel helpers -----------------------------

def _layer_norm(x, gamma, beta, col_mask, inv_dim, eps=1e-5):
    # LayerNorm over the real `dim` columns of a lane-padded (n, dim_pad) tile.
    # Padded columns of x are zero, so sum(x)/dim is the true mean; variance
    # masks the padded columns explicitly.  gamma/beta are zero-padded so the
    # padded output columns stay exactly zero.
    mean = jnp.sum(x, axis=-1, keepdims=True) * inv_dim
    diff = jnp.where(col_mask, x - mean, 0.0)
    var = jnp.sum(diff * diff, axis=-1, keepdims=True) * inv_dim
    return diff * lax.rsqrt(var + eps) * gamma + beta


def _softmax_last(z):
    m = jnp.max(z, axis=-1, keepdims=True)
    e = jnp.exp(z - m)
    return e * pl.reciprocal(jnp.sum(e, axis=-1, keepdims=True), approx=True)


def _gelu_tanh(x):
    # tanh-form GELU (single EUP tanh); ~1e-3 elementwise vs torch's erf GELU.
    c = math.sqrt(2.0 / math.pi)
    return 0.5 * x * (1.0 + jnp.tanh(c * (x + 0.044715 * x * x * x)))


# --------------------------------- kernel ------------------------------------

def transformer_kernel(dim, n_tokens, heads, dim_head,
                       x_ref, vec_ref, wqkv_ref, wo_ref, w1_ref, w2_ref,
                       o_ref):
    layer = pl.program_id(1)
    f32, bf16 = jnp.float32, jnp.bfloat16
    hd = heads * dim_head

    # o_ref's block index is constant across the depth (inner, "arbitrary")
    # grid axis, so x stays resident in VMEM across all layers; HBM writeback
    # happens once per batch element.
    @pl.when(layer == 0)
    def _():
        o_ref[...] = x_ref[...]

    x = o_ref[0].astype(f32)                       # (n_pad, dim_pad)
    n_pad, dim_pad = x.shape
    mlp_pad = w1_ref.shape[-1]

    # Packed per-layer vectors: [ln1_g, ln1_b, bo, ln2_g, ln2_b, b2, b1, 0].
    vec = vec_ref[0]                               # (8, max_pad)
    ln1_g = vec[0:1, :dim_pad]
    ln1_b = vec[1:2, :dim_pad]
    bo = vec[2:3, :dim_pad]
    ln2_g = vec[3:4, :dim_pad]
    ln2_b = vec[4:5, :dim_pad]
    b2 = vec[5:6, :dim_pad]
    b1 = vec[6:7, :mlp_pad]

    col_mask = lax.broadcasted_iota(jnp.int32, (1, dim_pad), 1) < dim
    key_mask = lax.broadcasted_iota(jnp.int32, (1, n_pad), 1) < n_tokens
    inv_dim = 1.0 / dim

    # -------------------- x = PreNorm(Attention)(x) + x --------------------
    y = _layer_norm(x, ln1_g, ln1_b, col_mask, inv_dim)
    # Single lane-dense QKV projection: (n, dim_pad) @ (dim_pad, 3*H*Dh).
    # The 1/sqrt(dim_head) scale is folded into the Q columns at init.
    qkv = jnp.dot(y.astype(bf16), wqkv_ref[0], preferred_element_type=f32)

    head_out = []
    for h in range(heads):                          # statically unrolled
        q_h = qkv[:, h * dim_head:(h + 1) * dim_head].astype(bf16)
        k_h = qkv[:, hd + h * dim_head: hd + (h + 1) * dim_head].astype(bf16)
        v_h = qkv[:, 2 * hd + h * dim_head: 2 * hd + (h + 1) * dim_head].astype(bf16)
        # q @ k^T via dot_general (transposed RHS handled natively by the MXU).
        s = lax.dot_general(q_h, k_h, (((1,), (1,)), ((), ())),
                            preferred_element_type=f32)          # (n_pad, n_pad)
        s = jnp.where(key_mask, s, -1e30)           # mask zero-padded key rows
        p = _softmax_last(s)
        head_out.append(jnp.dot(p.astype(bf16), v_h, preferred_element_type=f32))

    att = jnp.concatenate(head_out, axis=-1).astype(bf16)        # (n_pad, H*Dh)
    # Single output projection: the head reduction happens inside the MXU
    # accumulator with K = heads*dim_head; bias added once.
    x = x + jnp.dot(att, wo_ref[0], preferred_element_type=f32) + bo

    # ------------------- x = PreNorm(FeedForward)(x) + x -------------------
    y2 = _layer_norm(x, ln2_g, ln2_b, col_mask, inv_dim)
    h1 = jnp.dot(y2.astype(bf16), w1_ref[0], preferred_element_type=f32) + b1
    h1 = _gelu_tanh(h1)
    h2 = jnp.dot(h1.astype(bf16), w2_ref[0], preferred_element_type=f32) + b2
    x = x + h2

    o_ref[0] = x.astype(o_ref.dtype)


# --------------------------------- wrapper -----------------------------------

def run_transformer(x, params, *, depth, heads, dim_head, dim, mlp_dim):
    vecs, wqkv, wo, w1, w2 = params
    batch, n, d_in = x.shape
    assert d_in == dim
    n_pad = _round_up(n, 8)
    dim_pad = _round_up(dim, 128)
    mlp_pad = _round_up(mlp_dim, 128)
    max_pad = max(dim_pad, mlp_pad)
    hd = heads * dim_head

    x_pad = jnp.zeros((batch, n_pad, dim_pad), jnp.float32).at[:, :n, :dim].set(x)

    x_spec = pl.BlockSpec((1, n_pad, dim_pad), lambda b, l: (b, 0, 0))
    vec_spec = pl.BlockSpec((1, 8, max_pad), lambda b, l: (l, 0, 0))
    wqkv_spec = pl.BlockSpec((1, dim_pad, 3 * hd), lambda b, l: (l, 0, 0))
    wo_spec = pl.BlockSpec((1, hd, dim_pad), lambda b, l: (l, 0, 0))
    w1_spec = pl.BlockSpec((1, dim_pad, mlp_pad), lambda b, l: (l, 0, 0))
    w2_spec = pl.BlockSpec((1, mlp_pad, dim_pad), lambda b, l: (l, 0, 0))

    # Explicit VMEM budget: resident x (in+out) + double-buffered per-layer
    # weight set + headroom; floored at 32 MiB, capped at v7x's 64 MiB physical.
    blk_bytes = (2 * n_pad * dim_pad * 4
                 + 8 * max_pad * 4
                 + (dim_pad * 3 * hd + hd * dim_pad
                    + dim_pad * mlp_pad + mlp_pad * dim_pad) * 2)
    vmem_limit = int(min(64 << 20, max(32 << 20, 2 * blk_bytes + (4 << 20))))

    out = pl.pallas_call(
        partial(transformer_kernel, dim, n, heads, dim_head),
        grid=(batch, depth),
        out_shape=jax.ShapeDtypeStruct((batch, n_pad, dim_pad), jnp.float32),
        in_specs=[x_spec, vec_spec, wqkv_spec, wo_spec, w1_spec, w2_spec],
        out_specs=x_spec,
        compiler_params=pltpu.CompilerParams(
            dimension_semantics=("parallel", "arbitrary"),   # batch ∥, layers seq
            vmem_limit_bytes=vmem_limit),
    )(x_pad, vecs, wqkv, wo, w1, w2)
    return out[:, :n, :dim]


# --------------------------- deterministic params ----------------------------

def init_params(key, *, dim, depth, heads, dim_head, mlp_dim):
    dim_pad = _round_up(dim, 128)
    mlp_pad = _round_up(mlp_dim, 128)
    max_pad = max(dim_pad, mlp_pad)
    hd = heads * dim_head
    bf16 = jnp.bfloat16

    ks = jax.random.split(key, 9)
    scale = dim_head ** -0.5
    # Attention score scale folded into wq (constant fold at init).
    wq = jax.random.normal(ks[0], (depth, dim, hd), jnp.float32) * 0.05 * scale
    wk = jax.random.normal(ks[1], (depth, dim, hd), jnp.float32) * 0.05
    wv = jax.random.normal(ks[2], (depth, dim, hd), jnp.float32) * 0.05
    wo = jax.random.normal(ks[3], (depth, hd, dim), jnp.float32) * 0.05
    bo = jax.random.normal(ks[4], (depth, dim), jnp.float32) * 0.01
    w1 = jax.random.normal(ks[5], (depth, dim, mlp_dim), jnp.float32) * 0.05
    b1 = jax.random.normal(ks[6], (depth, mlp_dim), jnp.float32) * 0.01
    w2 = jax.random.normal(ks[7], (depth, mlp_dim, dim), jnp.float32) * 0.05
    b2 = jax.random.normal(ks[8], (depth, dim), jnp.float32) * 0.01

    # Fused, zero-padded QKV slab: (depth, dim_pad, 3*H*Dh), head-major columns.
    wqkv = jnp.zeros((depth, dim_pad, 3 * hd), jnp.float32)
    wqkv = wqkv.at[:, :dim, 0 * hd:1 * hd].set(wq)
    wqkv = wqkv.at[:, :dim, 1 * hd:2 * hd].set(wk)
    wqkv = wqkv.at[:, :dim, 2 * hd:3 * hd].set(wv)

    wo_p = jnp.zeros((depth, hd, dim_pad), jnp.float32).at[:, :, :dim].set(wo)
    w1_p = jnp.zeros((depth, dim_pad, mlp_pad), jnp.float32).at[:, :dim, :mlp_dim].set(w1)
    w2_p = jnp.zeros((depth, mlp_pad, dim_pad), jnp.float32).at[:, :mlp_dim, :dim].set(w2)

    # Packed per-layer vectors: rows = [ln1_g, ln1_b, bo, ln2_g, ln2_b, b2, b1, 0].
    vecs = jnp.zeros((depth, 8, max_pad), jnp.float32)
    vecs = vecs.at[:, 0, :dim].set(1.0)                 # ln1 gamma
    vecs = vecs.at[:, 2, :dim].set(bo)
    vecs = vecs.at[:, 3, :dim].set(1.0)                 # ln2 gamma
    vecs = vecs.at[:, 5, :dim].set(b2)
    vecs = vecs.at[:, 6, :mlp_dim].set(b1)

    return (vecs, wqkv.astype(bf16), wo_p.astype(bf16),
            w1_p.astype(bf16), w2_p.astype(bf16))


# ----------------------------------- main -------------------------------------

if __name__ == "__main__":
    # Small shapes consistent with the module's forward: x is (batch, n, dim).
    batch, n, dim = 2, 16, 32
    depth, heads, dim_head, mlp_dim = 2, 4, 16, 64

    key = jax.random.PRNGKey(0)
    key_x, key_p = jax.random.split(key)
    x = jax.random.normal(key_x, (batch, n, dim), jnp.float32)
    params = init_params(key_p, dim=dim, depth=depth, heads=heads,
                         dim_head=dim_head, mlp_dim=mlp_dim)

    out = run_transformer(x, params, depth=depth, heads=heads,
                          dim_head=dim_head, dim=dim, mlp_dim=mlp_dim)
    out = jax.block_until_ready(out)
    assert out.shape == (batch, n, dim) and out.dtype == jnp.float32
    assert bool(jnp.all(jnp.isfinite(out)))
    print("KERNEL_OK")
</pallas_src>

<mosaic_0001>
module attributes {stable_mosaic.version = 11 : i64} {
  func.func @transformer_kernel(%arg0: i32, %arg1: i32, %arg2: memref<1x16x128xf32, #tpu.memory_space<vmem>>, %arg3: memref<1x8x128xf32, #tpu.memory_space<vmem>>, %arg4: memref<1x128x192xbf16, #tpu.memory_space<vmem>>, %arg5: memref<1x64x128xbf16, #tpu.memory_space<vmem>>, %arg6: memref<1x128x128xbf16, #tpu.memory_space<vmem>>, %arg7: memref<1x128x128xbf16, #tpu.memory_space<vmem>>, %arg8: memref<1x16x128xf32, #tpu.memory_space<vmem>>) attributes {dimension_semantics = [#tpu.dimension_semantics<parallel>, #tpu.dimension_semantics<arbitrary>], iteration_bounds = array<i64: 2, 2>, scalar_prefetch = 0 : i64, scratch_operands = 0 : i64, tpu.core_type = #tpu.core_type<tc>, window_params = [{transform_indices = @transform_0, window_bounds = array<i64: 1, 16, 128>}, {transform_indices = @transform_1, window_bounds = array<i64: 1, 8, 128>}, {transform_indices = @transform_2, window_bounds = array<i64: 1, 128, 192>}, {transform_indices = @transform_3, window_bounds = array<i64: 1, 64, 128>}, {transform_indices = @transform_4, window_bounds = array<i64: 1, 128, 128>}, {transform_indices = @transform_5, window_bounds = array<i64: 1, 128, 128>}, {transform_indices = @transform_6, window_bounds = array<i64: 1, 16, 128>}]} {
    %c0_i32 = arith.constant 0 : i32
    %0 = arith.cmpi eq, %arg1, %c0_i32 : i32
    %1 = arith.extui %0 : i1 to i32
    %c0_i32_0 = arith.constant 0 : i32
    %2 = arith.cmpi ne, %1, %c0_i32_0 : i32
    scf.if %2 {
      %c0_60 = arith.constant 0 : index
      %c0_61 = arith.constant 0 : index
      %c0_62 = arith.constant 0 : index
      %201 = vector.load %arg2[%c0_60, %c0_61, %c0_62] : memref<1x16x128xf32, #tpu.memory_space<vmem>>, vector<1x16x128xf32>
      %c0_63 = arith.constant 0 : index
      %c0_64 = arith.constant 0 : index
      %c0_65 = arith.constant 0 : index
      %202 = vector.load %arg8[%c0_63, %c0_64, %c0_65] : memref<1x16x128xf32, #tpu.memory_space<vmem>>, vector<1x16x128xf32>
      tpu.vector_store %arg8[%c0_63, %c0_64, %c0_65], %201 {strides = array<i32>} : memref<1x16x128xf32, #tpu.memory_space<vmem>>, vector<1x16x128xf32>,
    } else {
    }
    %c0 = arith.constant 0 : index
    %c0_1 = arith.constant 0 : index
    %c0_2 = arith.constant 0 : index
    %3 = vector.load %arg8[%c0, %c0_1, %c0_2] : memref<1x16x128xf32, #tpu.memory_space<vmem>>, vector<1x16x128xf32>
    %4 = vector.shape_cast %3 : vector<1x16x128xf32> to vector<16x128xf32>
    %c0_3 = arith.constant 0 : index
    %c0_4 = arith.constant 0 : index
    %c0_5 = arith.constant 0 : index
    %5 = vector.load %arg3[%c0_3, %c0_4, %c0_5] : memref<1x8x128xf32, #tpu.memory_space<vmem>>, vector<1x8x128xf32>
    %6 = vector.shape_cast %5 : vector<1x8x128xf32> to vector<8x128xf32>
    %7 = vector.extract_strided_slice %6 {offsets = [0, 0], sizes = [1, 128], strides = [1, 1]} : vector<8x128xf32> to vector<1x128xf32>
    %8 = vector.extract_strided_slice %6 {offsets = [1, 0], sizes = [1, 128], strides = [1, 1]} : vector<8x128xf32> to vector<1x128xf32>
    %9 = vector.extract_strided_slice %6 {offsets = [2, 0], sizes = [1, 128], strides = [1, 1]} : vector<8x128xf32> to vector<1x128xf32>
    %10 = vector.extract_strided_slice %6 {offsets = [3, 0], sizes = [1, 128], strides = [1, 1]} : vector<8x128xf32> to vector<1x128xf32>
    %11 = vector.extract_strided_slice %6 {offsets = [4, 0], sizes = [1, 128], strides = [1, 1]} : vector<8x128xf32> to vector<1x128xf32>
    %12 = vector.extract_strided_slice %6 {offsets = [5, 0], sizes = [1, 128], strides = [1, 1]} : vector<8x128xf32> to vector<1x128xf32>
    %13 = vector.extract_strided_slice %6 {offsets = [6, 0], sizes = [1, 128], strides = [1, 1]} : vector<8x128xf32> to vector<1x128xf32>
    %14 = tpu.iota {dimensions = array<i32: 1>} : vector<1x128xi32>
    %c32_i32 = arith.constant 32 : i32
    %15 = vector.broadcast %c32_i32 : i32 to vector<1x128xi32>
    %16 = arith.cmpi slt, %14, %15 : vector<1x128xi32>
    %17 = tpu.iota {dimensions = array<i32: 1>} : vector<1x16xi32>
    %c16_i32 = arith.constant 16 : i32
    %18 = vector.broadcast %c16_i32 : i32 to vector<1x16xi32>
    %19 = arith.cmpi slt, %17, %18 : vector<1x16xi32>
    %cst = arith.constant dense<0.000000e+00> : vector<16xf32>
    %20 = vector.multi_reduction <add>, %4, %cst [1] : vector<16x128xf32> to vector<16xf32>
    %21 = vector.shape_cast %20 : vector<16xf32> to vector<16x1xf32>
    %cst_6 = arith.constant 3.125000e-02 : f32
    %22 = vector.broadcast %cst_6 : f32 to vector<16x1xf32>
    %23 = arith.mulf %21, %22 : vector<16x1xf32>
    %24 = vector.broadcast %23 : vector<16x1xf32> to vector<16x128xf32>
    %25 = arith.subf %4, %24 : vector<16x128xf32>
    %cst_7 = arith.constant 0.000000e+00 : f32
    %26 = vector.shape_cast %16 : vector<1x128xi1> to vector<1x128xi1>
    %27 = vector.broadcast %26 : vector<1x128xi1> to vector<16x128xi1>
    %28 = vector.broadcast %cst_7 : f32 to vector<16x128xf32>
    %29 = arith.select %27, %25, %28 : vector<16x128xi1>, vector<16x128xf32>
    %30 = arith.mulf %29, %29 : vector<16x128xf32>
    %cst_8 = arith.constant dense<0.000000e+00> : vector<16xf32>
    %31 = vector.multi_reduction <add>, %30, %cst_8 [1] : vector<16x128xf32> to vector<16xf32>
    %32 = vector.shape_cast %31 : vector<16xf32> to vector<16x1xf32>
    %cst_9 = arith.constant 3.125000e-02 : f32
    %33 = vector.broadcast %cst_9 : f32 to vector<16x1xf32>
    %34 = arith.mulf %32, %33 : vector<16x1xf32>
    %cst_10 = arith.constant 9.99999974E-6 : f32
    %35 = vector.broadcast %cst_10 : f32 to vector<16x1xf32>
    %36 = arith.addf %34, %35 : vector<16x1xf32>
    %37 = math.rsqrt %36 : vector<16x1xf32>
    %38 = vector.broadcast %37 : vector<16x1xf32> to vector<16x128xf32>
    %39 = arith.mulf %29, %38 : vector<16x128xf32>
    %40 = vector.broadcast %7 : vector<1x128xf32> to vector<16x128xf32>
    %41 = arith.mulf %39, %40 : vector<16x128xf32>
    %42 = vector.broadcast %8 : vector<1x128xf32> to vector<16x128xf32>
    %43 = arith.addf %41, %42 : vector<16x128xf32>
    %44 = arith.truncf %43 : vector<16x128xf32> to vector<16x128xbf16>
    %c0_11 = arith.constant 0 : index
    %c0_12 = arith.constant 0 : index
    %c0_13 = arith.constant 0 : index
    %45 = vector.load %arg4[%c0_11, %c0_12, %c0_13] : memref<1x128x192xbf16, #tpu.memory_space<vmem>>, vector<1x128x192xbf16>
    %46 = vector.shape_cast %45 : vector<1x128x192xbf16> to vector<128x192xbf16>
    %cst_14 = arith.constant dense<0.000000e+00> : vector<16x192xf32>
    %47 = tpu.matmul %44, %46, %cst_14 {dimension_numbers = #tpu.dot_dimension_numbers<[1], [0], [0], [1], [0, 0, 1, 1], [], []>} : vector<16x128xbf16>, vector<128x192xbf16>, vector<16x192xf32> -> vector<16x192xf32>
    %48 = vector.extract_strided_slice %47 {offsets = [0, 0], sizes = [16, 16], strides = [1, 1]} : vector<16x192xf32> to vector<16x16xf32>
    %49 = arith.truncf %48 : vector<16x16xf32> to vector<16x16xbf16>
    %50 = vector.extract_strided_slice %47 {offsets = [0, 64], sizes = [16, 16], strides = [1, 1]} : vector<16x192xf32> to vector<16x16xf32>
    %51 = arith.truncf %50 : vector<16x16xf32> to vector<16x16xbf16>
    %52 = vector.extract_strided_slice %47 {offsets = [0, 128], sizes = [16, 16], strides = [1, 1]} : vector<16x192xf32> to vector<16x16xf32>
    %53 = arith.truncf %52 : vector<16x16xf32> to vector<16x16xbf16>
    %cst_15 = arith.constant dense<0.000000e+00> : vector<16x16xf32>
    %54 = tpu.matmul %49, %51, %cst_15 {dimension_numbers = #tpu.dot_dimension_numbers<[1], [1], [0], [0], [0, 0, 1, 0], [], []>} : vector<16x16xbf16>, vector<16x16xbf16>, vector<16x16xf32> -> vector<16x16xf32>
    %cst_16 = arith.constant -1.000000e+30 : f32
    %55 = vector.shape_cast %19 : vector<1x16xi1> to vector<1x16xi1>
    %56 = vector.broadcast %55 : vector<1x16xi1> to vector<16x16xi1>
    %57 = vector.broadcast %cst_16 : f32 to vector<16x16xf32>
    %58 = arith.select %56, %54, %57 : vector<16x16xi1>, vector<16x16xf32>
    %cst_17 = arith.constant dense<0xFF800000> : vector<16xf32>
    %59 = vector.multi_reduction <maximumf>, %58, %cst_17 [1] : vector<16x16xf32> to vector<16xf32>
    %60 = vector.shape_cast %59 : vector<16xf32> to vector<16x1xf32>
    %61 = vector.broadcast %60 : vector<16x1xf32> to vector<16x16xf32>
    %62 = arith.subf %58, %61 : vector<16x16xf32>
    %63 = math.exp %62 : vector<16x16xf32>
    %cst_18 = arith.constant dense<0.000000e+00> : vector<16xf32>
    %64 = vector.multi_reduction <add>, %63, %cst_18 [1] : vector<16x16xf32> to vector<16xf32>
    %65 = vector.shape_cast %64 : vector<16xf32> to vector<16x1xf32>
    %66 = tpu.reciprocal %65 {approx = true} : vector<16x1xf32> -> vector<16x1xf32>
    %67 = vector.broadcast %66 : vector<16x1xf32> to vector<16x16xf32>
    %68 = arith.mulf %63, %67 : vector<16x16xf32>
    %69 = arith.truncf %68 : vector<16x16xf32> to vector<16x16xbf16>
    %cst_19 = arith.constant dense<0.000000e+00> : vector<16x16xf32>
    %70 = tpu.matmul %69, %53, %cst_19 {dimension_numbers = #tpu.dot_dimension_numbers<[1], [0], [0], [1], [0, 0, 1, 1], [], []>} : vector<16x16xbf16>, vector<16x16xbf16>, vector<16x16xf32> -> vector<16x16xf32>
    %71 = vector.extract_strided_slice %47 {offsets = [0, 16], sizes = [16, 16], strides = [1, 1]} : vector<16x192xf32> to vector<16x16xf32>
    %72 = arith.truncf %71 : vector<16x16xf32> to vector<16x16xbf16>
    %73 = vector.extract_strided_slice %47 {offsets = [0, 80], sizes = [16, 16], strides = [1, 1]} : vector<16x192xf32> to vector<16x16xf32>
    %74 = arith.truncf %73 : vector<16x16xf32> to vector<16x16xbf16>
    %75 = vector.extract_strided_slice %47 {offsets = [0, 144], sizes = [16, 16], strides = [1, 1]} : vector<16x192xf32> to vector<16x16xf32>
    %76 = arith.truncf %75 : vector<16x16xf32> to vector<16x16xbf16>
    %cst_20 = arith.constant dense<0.000000e+00> : vector<16x16xf32>
    %77 = tpu.matmul %72, %74, %cst_20 {dimension_numbers = #tpu.dot_dimension_numbers<[1], [1], [0], [0], [0, 0, 1, 0], [], []>} : vector<16x16xbf16>, vector<16x16xbf16>, vector<16x16xf32> -> vector<16x16xf32>
    %cst_21 = arith.constant -1.000000e+30 : f32
    %78 = vector.shape_cast %19 : vector<1x16xi1> to vector<1x16xi1>
    %79 = vector.broadcast %78 : vector<1x16xi1> to vector<16x16xi1>
    %80 = vector.broadcast %cst_21 : f32 to vector<16x16xf32>
    %81 = arith.select %79, %77, %80 : vector<16x16xi1>, vector<16x16xf32>
    %cst_22 = arith.constant dense<0xFF800000> : vector<16xf32>
    %82 = vector.multi_reduction <maximumf>, %81, %cst_22 [1] : vector<16x16xf32> to vector<16xf32>
    %83 = vector.shape_cast %82 : vector<16xf32> to vector<16x1xf32>
    %84 = vector.broadcast %83 : vector<16x1xf32> to vector<16x16xf32>
    %85 = arith.subf %81, %84 : vector<16x16xf32>
    %86 = math.exp %85 : vector<16x16xf32>
    %cst_23 = arith.constant dense<0.000000e+00> : vector<16xf32>
    %87 = vector.multi_reduction <add>, %86, %cst_23 [1] : vector<16x16xf32> to vector<16xf32>
    %88 = vector.shape_cast %87 : vector<16xf32> to vector<16x1xf32>
    %89 = tpu.reciprocal %88 {approx = true} : vector<16x1xf32> -> vector<16x1xf32>
    %90 = vector.broadcast %89 : vector<16x1xf32> to vector<16x16xf32>
    %91 = arith.mulf %86, %90 : vector<16x16xf32>
    %92 = arith.truncf %91 : vector<16x16xf32> to vector<16x16xbf16>
    %cst_24 = arith.constant dense<0.000000e+00> : vector<16x16xf32>
    %93 = tpu.matmul %92, %76, %cst_24 {dimension_numbers = #tpu.dot_dimension_numbers<[1], [0], [0], [1], [0, 0, 1, 1], [], []>} : vector<16x16xbf16>, vector<16x16xbf16>, vector<16x16xf32> -> vector<16x16xf32>
    %94 = vector.extract_strided_slice %47 {offsets = [0, 32], sizes = [16, 16], strides = [1, 1]} : vector<16x192xf32> to vector<16x16xf32>
    %95 = arith.truncf %94 : vector<16x16xf32> to vector<16x16xbf16>
    %96 = vector.extract_strided_slice %47 {offsets = [0, 96], sizes = [16, 16], strides = [1, 1]} : vector<16x192xf32> to vector<16x16xf32>
    %97 = arith.truncf %96 : vector<16x16xf32> to vector<16x16xbf16>
    %98 = vector.extract_strided_slice %47 {offsets = [0, 160], sizes = [16, 16], strides = [1, 1]} : vector<16x192xf32> to vector<16x16xf32>
    %99 = arith.truncf %98 : vector<16x16xf32> to vector<16x16xbf16>
    %cst_25 = arith.constant dense<0.000000e+00> : vector<16x16xf32>
    %100 = tpu.matmul %95, %97, %cst_25 {dimension_numbers = #tpu.dot_dimension_numbers<[1], [1], [0], [0], [0, 0, 1, 0], [], []>} : vector<16x16xbf16>, vector<16x16xbf16>, vector<16x16xf32> -> vector<16x16xf32>
    %cst_26 = arith.constant -1.000000e+30 : f32
    %101 = vector.shape_cast %19 : vector<1x16xi1> to vector<1x16xi1>
    %102 = vector.broadcast %101 : vector<1x16xi1> to vector<16x16xi1>
    %103 = vector.broadcast %cst_26 : f32 to vector<16x16xf32>
    %104 = arith.select %102, %100, %103 : vector<16x16xi1>, vector<16x16xf32>
    %cst_27 = arith.constant dense<0xFF800000> : vector<16xf32>
    %105 = vector.multi_reduction <maximumf>, %104, %cst_27 [1] : vector<16x16xf32> to vector<16xf32>
    %106 = vector.shape_cast %105 : vector<16xf32> to vector<16x1xf32>
    %107 = vector.broadcast %106 : vector<16x1xf32> to vector<16x16xf32>
    %108 = arith.subf %104, %107 : vector<16x16xf32>
    %109 = math.exp %108 : vector<16x16xf32>
    %cst_28 = arith.constant dense<0.000000e+00> : vector<16xf32>
    %110 = vector.multi_reduction <add>, %109, %cst_28 [1] : vector<16x16xf32> to vector<16xf32>
    %111 = vector.shape_cast %110 : vector<16xf32> to vector<16x1xf32>
    %112 = tpu.reciprocal %111 {approx = true} : vector<16x1xf32> -> vector<16x1xf32>
    %113 = vector.broadcast %112 : vector<16x1xf32> to vector<16x16xf32>
    %114 = arith.mulf %109, %113 : vector<16x16xf32>
    %115 = arith.truncf %114 : vector<16x16xf32> to vector<16x16xbf16>
    %cst_29 = arith.constant dense<0.000000e+00> : vector<16x16xf32>
    %116 = tpu.matmul %115, %99, %cst_29 {dimension_numbers = #tpu.dot_dimension_numbers<[1], [0], [0], [1], [0, 0, 1, 1], [], []>} : vector<16x16xbf16>, vector<16x16xbf16>, vector<16x16xf32> -> vector<16x16xf32>
    %117 = vector.extract_strided_slice %47 {offsets = [0, 48], sizes = [16, 16], strides = [1, 1]} : vector<16x192xf32> to vector<16x16xf32>
    %118 = arith.truncf %117 : vector<16x16xf32> to vector<16x16xbf16>
    %119 = vector.extract_strided_slice %47 {offsets = [0, 112], sizes = [16, 16], strides = [1, 1]} : vector<16x192xf32> to vector<16x16xf32>
    %120 = arith.truncf %119 : vector<16x16xf32> to vector<16x16xbf16>
    %121 = vector.extract_strided_slice %47 {offsets = [0, 176], sizes = [16, 16], strides = [1, 1]} : vector<16x192xf32> to vector<16x16xf32>
    %122 = arith.truncf %121 : vector<16x16xf32> to vector<16x16xbf16>
    %cst_30 = arith.constant dense<0.000000e+00> : vector<16x16xf32>
    %123 = tpu.matmul %118, %120, %cst_30 {dimension_numbers = #tpu.dot_dimension_numbers<[1], [1], [0], [0], [0, 0, 1, 0], [], []>} : vector<16x16xbf16>, vector<16x16xbf16>, vector<16x16xf32> -> vector<16x16xf32>
    %cst_31 = arith.constant -1.000000e+30 : f32
    %124 = vector.shape_cast %19 : vector<1x16xi1> to vector<1x16xi1>
    %125 = vector.broadcast %124 : vector<1x16xi1> to vector<16x16xi1>
    %126 = vector.broadcast %cst_31 : f32 to vector<16x16xf32>
    %127 = arith.select %125, %123, %126 : vector<16x16xi1>, vector<16x16xf32>
    %cst_32 = arith.constant dense<0xFF800000> : vector<16xf32>
    %128 = vector.multi_reduction <maximumf>, %127, %cst_32 [1] : vector<16x16xf32> to vector<16xf32>
    %129 = vector.shape_cast %128 : vector<16xf32> to vector<16x1xf32>
    %130 = vector.broadcast %129 : vector<16x1xf32> to vector<16x16xf32>
    %131 = arith.subf %127, %130 : vector<16x16xf32>
    %132 = math.exp %131 : vector<16x16xf32>
    %cst_33 = arith.constant dense<0.000000e+00> : vector<16xf32>
    %133 = vector.multi_reduction <add>, %132, %cst_33 [1] : vector<16x16xf32> to vector<16xf32>
    %134 = vector.shape_cast %133 : vector<16xf32> to vector<16x1xf32>
    %135 = tpu.reciprocal %134 {approx = true} : vector<16x1xf32> -> vector<16x1xf32>
    %136 = vector.broadcast %135 : vector<16x1xf32> to vector<16x16xf32>
    %137 = arith.mulf %132, %136 : vector<16x16xf32>
    %138 = arith.truncf %137 : vector<16x16xf32> to vector<16x16xbf16>
    %cst_34 = arith.constant dense<0.000000e+00> : vector<16x16xf32>
    %139 = tpu.matmul %138, %122, %cst_34 {dimension_numbers = #tpu.dot_dimension_numbers<[1], [0], [0], [1], [0, 0, 1, 1], [], []>} : vector<16x16xbf16>, vector<16x16xbf16>, vector<16x16xf32> -> vector<16x16xf32>
    %140 = tpu.concatenate %70, %93, %116, %139 in 1 : vector<16x16xf32>, vector<16x16xf32>, vector<16x16xf32>, vector<16x16xf32> -> vector<16x64xf32>
    %141 = arith.truncf %140 : vector<16x64xf32> to vector<16x64xbf16>
    %c0_35 = arith.constant 0 : index
    %c0_36 = arith.constant 0 : index
    %c0_37 = arith.constant 0 : index
    %142 = vector.load %arg5[%c0_35, %c0_36, %c0_37] : memref<1x64x128xbf16, #tpu.memory_space<vmem>>, vector<1x64x128xbf16>
    %143 = vector.shape_cast %142 : vector<1x64x128xbf16> to vector<64x128xbf16>
    %cst_38 = arith.constant dense<0.000000e+00> : vector<16x128xf32>
    %144 = tpu.matmul %141, %143, %cst_38 {dimension_numbers = #tpu.dot_dimension_numbers<[1], [0], [0], [1], [0, 0, 1, 1], [], []>} : vector<16x64xbf16>, vector<64x128xbf16>, vector<16x128xf32> -> vector<16x128xf32>
    %145 = arith.addf %4, %144 : vector<16x128xf32>
    %146 = vector.broadcast %9 : vector<1x128xf32> to vector<16x128xf32>
    %147 = arith.addf %145, %146 : vector<16x128xf32>
    %cst_39 = arith.constant dense<0.000000e+00> : vector<16xf32>
    %148 = vector.multi_reduction <add>, %147, %cst_39 [1] : vector<16x128xf32> to vector<16xf32>
    %149 = vector.shape_cast %148 : vector<16xf32> to vector<16x1xf32>
    %cst_40 = arith.constant 3.125000e-02 : f32
    %150 = vector.broadcast %cst_40 : f32 to vector<16x1xf32>
    %151 = arith.mulf %149, %150 : vector<16x1xf32>
    %152 = vector.broadcast %151 : vector<16x1xf32> to vector<16x128xf32>
    %153 = arith.subf %147, %152 : vector<16x128xf32>
    %cst_41 = arith.constant 0.000000e+00 : f32
    %154 = vector.shape_cast %16 : vector<1x128xi1> to vector<1x128xi1>
    %155 = vector.broadcast %154 : vector<1x128xi1> to vector<16x128xi1>
    %156 = vector.broadcast %cst_41 : f32 to vector<16x128xf32>
    %157 = arith.select %155, %153, %156 : vector<16x128xi1>, vector<16x128xf32>
    %158 = arith.mulf %157, %157 : vector<16x128xf32>
    %cst_42 = arith.constant dense<0.000000e+00> : vector<16xf32>
    %159 = vector.multi_reduction <add>, %158, %cst_42 [1] : vector<16x128xf32> to vector<16xf32>
    %160 = vector.shape_cast %159 : vector<16xf32> to vector<16x1xf32>
    %cst_43 = arith.constant 3.125000e-02 : f32
    %161 = vector.broadcast %cst_43 : f32 to vector<16x1xf32>
    %162 = arith.mulf %160, %161 : vector<16x1xf32>
    %cst_44 = arith.constant 9.99999974E-6 : f32
    %163 = vector.broadcast %cst_44 : f32 to vector<16x1xf32>
    %164 = arith.addf %162, %163 : vector<16x1xf32>
    %165 = math.rsqrt %164 : vector<16x1xf32>
    %166 = vector.broadcast %165 : vector<16x1xf32> to vector<16x128xf32>
    %167 = arith.mulf %157, %166 : vector<16x128xf32>
    %168 = vector.broadcast %10 : vector<1x128xf32> to vector<16x128xf32>
    %169 = arith.mulf %167, %168 : vector<16x128xf32>
    %170 = vector.broadcast %11 : vector<1x128xf32> to vector<16x128xf32>
    %171 = arith.addf %169, %170 : vector<16x128xf32>
    %172 = arith.truncf %171 : vector<16x128xf32> to vector<16x128xbf16>
    %c0_45 = arith.constant 0 : index
    %c0_46 = arith.constant 0 : index
    %c0_47 = arith.constant 0 : index
    %173 = vector.load %arg6[%c0_45, %c0_46, %c0_47] : memref<1x128x128xbf16, #tpu.memory_space<vmem>>, vector<1x128x128xbf16>
    %174 = vector.shape_cast %173 : vector<1x128x128xbf16> to vector<128x128xbf16>
    %cst_48 = arith.constant dense<0.000000e+00> : vector<16x128xf32>
    %175 = tpu.matmul %172, %174, %cst_48 {dimension_numbers = #tpu.dot_dimension_numbers<[1], [0], [0], [1], [0, 0, 1, 1], [], []>} : vector<16x128xbf16>, vector<128x128xbf16>, vector<16x128xf32> -> vector<16x128xf32>
    %176 = vector.broadcast %13 : vector<1x128xf32> to vector<16x128xf32>
    %177 = arith.addf %175, %176 : vector<16x128xf32>
    %cst_49 = arith.constant 5.000000e-01 : f32
    %178 = vector.broadcast %cst_49 : f32 to vector<16x128xf32>
    %179 = arith.mulf %178, %177 : vector<16x128xf32>
    %cst_50 = arith.constant 4.471500e-02 : f32
    %180 = vector.broadcast %cst_50 : f32 to vector<16x128xf32>
    %181 = arith.mulf %180, %177 : vector<16x128xf32>
    %182 = arith.mulf %181, %177 : vector<16x128xf32>
    %183 = arith.mulf %182, %177 : vector<16x128xf32>
    %184 = arith.addf %177, %183 : vector<16x128xf32>
    %cst_51 = arith.constant 0.797884583 : f32
    %185 = vector.broadcast %cst_51 : f32 to vector<16x128xf32>
    %186 = arith.mulf %185, %184 : vector<16x128xf32>
    %187 = math.tanh %186 : vector<16x128xf32>
    %cst_52 = arith.constant 1.000000e+00 : f32
    %188 = vector.broadcast %cst_52 : f32 to vector<16x128xf32>
    %189 = arith.addf %188, %187 : vector<16x128xf32>
    %190 = arith.mulf %179, %189 : vector<16x128xf32>
    %191 = arith.truncf %190 : vector<16x128xf32> to vector<16x128xbf16>
    %c0_53 = arith.constant 0 : index
    %c0_54 = arith.constant 0 : index
    %c0_55 = arith.constant 0 : index
    %192 = vector.load %arg7[%c0_53, %c0_54, %c0_55] : memref<1x128x128xbf16, #tpu.memory_space<vmem>>, vector<1x128x128xbf16>
    %193 = vector.shape_cast %192 : vector<1x128x128xbf16> to vector<128x128xbf16>
    %cst_56 = arith.constant dense<0.000000e+00> : vector<16x128xf32>
    %194 = tpu.matmul %191, %193, %cst_56 {dimension_numbers = #tpu.dot_dimension_numbers<[1], [0], [0], [1], [0, 0, 1, 1], [], []>} : vector<16x128xbf16>, vector<128x128xbf16>, vector<16x128xf32> -> vector<16x128xf32>
    %195 = vector.broadcast %12 : vector<1x128xf32> to vector<16x128xf32>
    %196 = arith.addf %194, %195 : vector<16x128xf32>
    %197 = arith.addf %147, %196 : vector<16x128xf32>
    %c0_57 = arith.constant 0 : index
    %c0_58 = arith.constant 0 : index
    %c0_59 = arith.constant 0 : index
    %198 = vector.load %arg8[%c0_57, %c0_58, %c0_59] : memref<1x16x128xf32, #tpu.memory_space<vmem>>, vector<1x16x128xf32>
    %199 = vector.shape_cast %198 : vector<1x16x128xf32> to vector<16x128xf32>
    %200 = vector.shape_cast %197 : vector<16x128xf32> to vector<1x16x128xf32>
    tpu.vector_store %arg8[%c0_57, %c0_58, %c0_59], %200 {strides = array<i32>} : memref<1x16x128xf32, #tpu.memory_space<vmem>>, vector<1x16x128xf32>,
    return
  }
  func.func @transform_0(%arg0: i32, %arg1: i32) -> (i32, i32, i32) {
    %c0_i32 = arith.constant 0 : i32
    %c0_i32_0 = arith.constant 0 : i32
    %c0_i32_1 = arith.constant 0 : i32
    return %arg0, %c0_i32, %c0_i32_0 : i32, i32, i32
  }
  func.func @transform_1(%arg0: i32, %arg1: i32) -> (i32, i32, i32) {
    %c0_i32 = arith.constant 0 : i32
    %c0_i32_0 = arith.constant 0 : i32
    %c0_i32_1 = arith.constant 0 : i32
    return %arg1, %c0_i32, %c0_i32_0 : i32, i32, i32
  }
  func.func @transform_2(%arg0: i32, %arg1: i32) -> (i32, i32, i32) {
    %c0_i32 = arith.constant 0 : i32
    %c0_i32_0 = arith.constant 0 : i32
    %c0_i32_1 = arith.constant 0 : i32
    return %arg1, %c0_i32, %c0_i32_0 : i32, i32, i32
  }
  func.func @transform_3(%arg0: i32, %arg1: i32) -> (i32, i32, i32) {
    %c0_i32 = arith.constant 0 : i32
    %c0_i32_0 = arith.constant 0 : i32
    %c0_i32_1 = arith.constant 0 : i32
    return %arg1, %c0_i32, %c0_i32_0 : i32, i32, i32
  }
  func.func @transform_4(%arg0: i32, %arg1: i32) -> (i32, i32, i32) {
    %c0_i32 = arith.constant 0 : i32
    %c0_i32_0 = arith.constant 0 : i32
    %c0_i32_1 = arith.constant 0 : i32
    return %arg1, %c0_i32, %c0_i32_0 : i32, i32, i32
  }
  func.func @transform_5(%arg0: i32, %arg1: i32) -> (i32, i32, i32) {
    %c0_i32 = arith.constant 0 : i32
    %c0_i32_0 = arith.constant 0 : i32
    %c0_i32_1 = arith.constant 0 : i32
    return %arg1, %c0_i32, %c0_i32_0 : i32, i32, i32
  }
  func.func @transform_6(%arg0: i32, %arg1: i32) -> (i32, i32, i32) {
    %c0_i32 = arith.constant 0 : i32
    %c0_i32_0 = arith.constant 0 : i32
    %c0_i32_1 = arith.constant 0 : i32
    return %arg0, %c0_i32, %c0_i32_0 : i32, i32, i32
  }
}

</mosaic_0001>

<llo_original>
// kernel: tpu_custom_call.1
$region0: #{tpu_custom_call.1}
  #allocation0 [shape = 'u32[]', space=smem, size = 0x4, offset = 0x4, fixed_abs, tag = 'smem constant byte address 0x4 - core index']
  #allocation1 [shape = 'u32[144,128]{1,0:T(1,128)}', space=vmem, size = 0x12000, scoped, tag = 'internal scratch']
  %s0 = inlined_call_operand.vmem [shape: f32[2,16,128], index: 0, kind: input, shape index: {}]
  %s1 = inlined_call_operand.vmem [shape: f32[2,8,128], index: 1, kind: input, shape index: {}]
  %s2 = inlined_call_operand.vmem [shape: bf16[2,128,192], index: 2, kind: input, shape index: {}]
  %s3 = inlined_call_operand.vmem [shape: bf16[2,64,128], index: 3, kind: input, shape index: {}]
  %s4 = inlined_call_operand.vmem [shape: bf16[2,128,128], index: 4, kind: input, shape index: {}]
  %s5 = inlined_call_operand.vmem [shape: bf16[2,128,128], index: 5, kind: input, shape index: {}]
  %s6 = inlined_call_operand.hbm [shape: f32[2,16,128], index: 6, kind: output, shape index: {}]
  %s7 = sld [smem:[#allocation0]]
  $region61: #{tpu_custom_call.1} parent=0
    _
  %s9 = ssub.s32 1, %s7
  %s10 = scalar_select 0, %s9, %s7
  $region1: #{tpu_custom_call.1} parent=0
    #allocation2 [shape = 'u8[16384]{0}', space=vmem, size = 0x4000, scoped, tag = 'output window, operand 0']
    #allocation3 [shape = 's32[2]{0}', space=sflag, size = 0x8, scoped, tag = 'scoped memory for tpu_custom_call.1']
    %11 = vsyncpa [#allocation3], 0
    %s12 = scalar_lea.sflag [#allocation3], 1
    %13 = vsyncpa %s12, 0
    loop: start=0, step=1, limit=6
    $region2: #{tpu_custom_call.1} parent=1 // loop_pre_header
      _
    $region3: #{tpu_custom_call.1} parent=1 // loop_header
      %s15 = sphi 0, %s19
      %p16 = scmp.ge.s32.totalorder %s15, 6
      %s22 = sphi 0, %s34
      %s23 = sphi 0, %s30
      %s24 = sphi 0, %s22
      %s25 = sphi 0, %s23
      %s26 = sphi 0, %s24
      %s27 = sphi 0, %s25
      %s37 = sphi 0, %s39
      %s40 = sphi 0, %s37
      %s41 = sphi 0, %s40
      %s57 = sphi 0, %s41
      %s63 = sphi 0, %s65
      %s66 = sphi 0, %s63
      %s67 = sphi 0, %s66
      %s83 = sphi 0, %s67
      %s89 = sphi 0, %s91
      %s92 = sphi 0, %s89
      %s93 = sphi 0, %s92
      %s109 = sphi 0, %s93
      %s115 = sphi 0, %s117
      %s118 = sphi 0, %s115
      %s119 = sphi 0, %s118
      %s135 = sphi 0, %s119
      %s141 = sphi 0, %s143
      %s144 = sphi 0, %s141
      %s145 = sphi 0, %s144
      %s161 = sphi 0, %s145
      %s167 = sphi 0, %s169
      %s170 = sphi 0, %s167
      %s171 = sphi 0, %s170
      %s187 = sphi 0, %s171
      %s193 = sphi 0, %s195
      %s196 = sphi 0, %s193
      %s197 = sphi 0, %s196
      %s213 = sphi 0, %s197
    $region4: #{tpu_custom_call.1} parent=1 // loop_header_branch
      %18 = sbr.rel (%p16) target = $region8
    $region5: #{tpu_custom_call.1} parent=1 // loop_body
      %s20 = ssub.s32 %s15, 1
      %s21 = ssub.s32 %s15, 2
      %s28 = sadd.s32 1, %s23
      %p29 = scmp.ge.s32.totalorder %s28, 2
      %s30 = scalar_select %p29, 0, %s28
      %s31 = sadd.s32 1, %s22
      %s32 = scalar_select %p29, %s31, %s22
      %p33 = scmp.ge.s32.totalorder %s32, 2
      %s34 = scalar_select %p33, 0, %s32
      %s35 = ssub.s32 %s22, %s34
      %p36 = scmp.eq.s32.totalorder %s35, 0
      %s38 = sadd.s32 %s37, 1
      %s39 = scalar_select %p36, %s37, %s38
      %p42 = pneg %p36
      %p43 = scmp.eq.s32.totalorder %s15, 3
      %p44 = por %p42, %p43
      %p45 = scmp.ne.s32.totalorder %s37, %s40
      %p46 = scmp.eq.s32.totalorder %s15, 0
      %p47 = por %p45, %p46
      %p48 = scmp.ne.s32.totalorder %s37, %s40
      %p49 = scmp.eq.s32.totalorder %s20, 3
      %p50 = por %p48, %p49
      %p51 = scmp.ne.s32.totalorder %s40, %s41
      %p52 = scmp.eq.s32.totalorder %s20, 0
      %p53 = por %p51, %p52
      %p54 = scmp.ne.s32.totalorder %s40, %s41
      %p55 = scmp.eq.s32.totalorder %s21, 3
      %p56 = por %p54, %p55
      %p58 = scmp.ne.s32.totalorder %s41, %s57
      %p59 = scmp.eq.s32.totalorder %s21, 0
      %p60 = por %p58, %p59
      %s61 = ssub.s32 %s23, %s30
      %p62 = scmp.eq.s32.totalorder %s61, 0
      %s64 = sadd.s32 %s63, 1
      %s65 = scalar_select %p62, %s63, %s64
      %p68 = pneg %p62
      %p69 = scmp.eq.s32.totalorder %s15, 3
      %p70 = por %p68, %p69
      %p71 = scmp.ne.s32.totalorder %s63, %s66
      %p72 = scmp.eq.s32.totalorder %s15, 0
      %p73 = por %p71, %p72
      %p74 = scmp.ne.s32.totalorder %s63, %s66
      %p75 = scmp.eq.s32.totalorder %s20, 3
      %p76 = por %p74, %p75
      %p77 = scmp.ne.s32.totalorder %s66, %s67
      %p78 = scmp.eq.s32.totalorder %s20, 0
      %p79 = por %p77, %p78
      %p80 = scmp.ne.s32.totalorder %s66, %s67
      %p81 = scmp.eq.s32.totalorder %s21, 3
      %p82 = por %p80, %p81
      %p84 = scmp.ne.s32.totalorder %s67, %s83
      %p85 = scmp.eq.s32.totalorder %s21, 0
      %p86 = por %p84, %p85
      %s87 = ssub.s32 %s23, %s30
      %p88 = scmp.eq.s32.totalorder %s87, 0
      %s90 = sadd.s32 %s89, 1
      %s91 = scalar_select %p88, %s89, %s90
      %p94 = pneg %p88
      %p95 = scmp.eq.s32.totalorder %s15, 3
      %p96 = por %p94, %p95
      %p97 = scmp.ne.s32.totalorder %s89, %s92
      %p98 = scmp.eq.s32.totalorder %s15, 0
      %p99 = por %p97, %p98
      %p100 = scmp.ne.s32.totalorder %s89, %s92
      %p101 = scmp.eq.s32.totalorder %s20, 3
      %p102 = por %p100, %p101
      %p103 = scmp.ne.s32.totalorder %s92, %s93
      %p104 = scmp.eq.s32.totalorder %s20, 0
      %p105 = por %p103, %p104
      %p106 = scmp.ne.s32.totalorder %s92, %s93
      %p107 = scmp.eq.s32.totalorder %s21, 3
      %p108 = por %p106, %p107
      %p110 = scmp.ne.s32.totalorder %s93, %s109
      %p111 = scmp.eq.s32.totalorder %s21, 0
      %p112 = por %p110, %p111
      %s113 = ssub.s32 %s23, %s30
      %p114 = scmp.eq.s32.totalorder %s113, 0
      %s116 = sadd.s32 %s115, 1
      %s117 = scalar_select %p114, %s115, %s116
      %p120 = pneg %p114
      %p121 = scmp.eq.s32.totalorder %s15, 3
      %p122 = por %p120, %p121
      %p123 = scmp.ne.s32.totalorder %s115, %s118
      %p124 = scmp.eq.s32.totalorder %s15, 0
      %p125 = por %p123, %p124
      %p126 = scmp.ne.s32.totalorder %s115, %s118
      %p127 = scmp.eq.s32.totalorder %s20, 3
      %p128 = por %p126, %p127
      %p129 = scmp.ne.s32.totalorder %s118, %s119
      %p130 = scmp.eq.s32.totalorder %s20, 0
      %p131 = por %p129, %p130
      %p132 = scmp.ne.s32.totalorder %s118, %s119
      %p133 = scmp.eq.s32.totalorder %s21, 3
      %p134 = por %p132, %p133
      %p136 = scmp.ne.s32.totalorder %s119, %s135
      %p137 = scmp.eq.s32.totalorder %s21, 0
      %p138 = por %p136, %p137
      %s139 = ssub.s32 %s23, %s30
      %p140 = scmp.eq.s32.totalorder %s139, 0
      %s142 = sadd.s32 %s141, 1
      %s143 = scalar_select %p140, %s141, %s142
      %p146 = pneg %p140
      %p147 = scmp.eq.s32.totalorder %s15, 3
      %p148 = por %p146, %p147
      %p149 = scmp.ne.s32.totalorder %s141, %s144
      %p150 = scmp.eq.s32.totalorder %s15, 0
      %p151 = por %p149, %p150
      %p152 = scmp.ne.s32.totalorder %s141, %s144
      %p153 = scmp.eq.s32.totalorder %s20, 3
      %p154 = por %p152, %p153
      %p155 = scmp.ne.s32.totalorder %s144, %s145
      %p156 = scmp.eq.s32.totalorder %s20, 0
      %p157 = por %p155, %p156
      %p158 = scmp.ne.s32.totalorder %s144, %s145
      %p159 = scmp.eq.s32.totalorder %s21, 3
      %p160 = por %p158, %p159
      %p162 = scmp.ne.s32.totalorder %s145, %s161
      %p163 = scmp.eq.s32.totalorder %s21, 0
      %p164 = por %p162, %p163
      %s165 = ssub.s32 %s23, %s30
      %p166 = scmp.eq.s32.totalorder %s165, 0
      %s168 = sadd.s32 %s167, 1
      %s169 = scalar_select %p166, %s167, %s168
      %p172 = pneg %p166
      %p173 = scmp.eq.s32.totalorder %s15, 3
      %p174 = por %p172, %p173
      %p175 = scmp.ne.s32.totalorder %s167, %s170
      %p176 = scmp.eq.s32.totalorder %s15, 0
      %p177 = por %p175, %p176
      %p178 = scmp.ne.s32.totalorder %s167, %s170
      %p179 = scmp.eq.s32.totalorder %s20, 3
      %p180 = por %p178, %p179
      %p181 = scmp.ne.s32.totalorder %s170, %s171
      %p182 = scmp.eq.s32.totalorder %s20, 0
      %p183 = por %p181, %p182
      %p184 = scmp.ne.s32.totalorder %s170, %s171
      %p185 = scmp.eq.s32.totalorder %s21, 3
      %p186 = por %p184, %p185
      %p188 = scmp.ne.s32.totalorder %s171, %s187
      %p189 = scmp.eq.s32.totalorder %s21, 0
      %p190 = por %p188, %p189
      %s191 = ssub.s32 %s22, %s34
      %p192 = scmp.eq.s32.totalorder %s191, 0
      %s194 = sadd.s32 %s193, 1
      %s195 = scalar_select %p192, %s193, %s194
      %p198 = pneg %p192
      %p199 = scmp.eq.s32.totalorder %s15, 3
      %p200 = por %p198, %p199
      %p201 = scmp.ne.s32.totalorder %s193, %s196
      %p202 = scmp.eq.s32.totalorder %s15, 0
      %p203 = por %p201, %p202
      %p204 = scmp.ne.s32.totalorder %s193, %s196
      %p205 = scmp.eq.s32.totalorder %s20, 3
      %p206 = por %p204, %p205
      %p207 = scmp.ne.s32.totalorder %s196, %s197
      %p208 = scmp.eq.s32.totalorder %s20, 0
      %p209 = por %p207, %p208
      %p210 = scmp.ne.s32.totalorder %s196, %s197
      %p211 = scmp.eq.s32.totalorder %s21, 3
      %p212 = por %p210, %p211
      %p214 = scmp.ne.s32.totalorder %s197, %s213
      %p215 = scmp.eq.s32.totalorder %s21, 0
      %p216 = por %p214, %p215
      %p217 = scmp.le.s32.totalorder 1, %s15
      %p218 = scmp.lt.s32.totalorder %s15, 5
      %p219 = pnand %p217, %p218
      %p220 = pneg %p219
      // Predicated region
      $region9: #{tpu_custom_call.1} parent=5 // pred_check
        _
      $region10: #{tpu_custom_call.1} parent=5 // pred_check_branch
        %222 = sbr.rel (%p219) target = $region12
      $region11: #{tpu_custom_call.1} parent=5 // pred_region
        %s223 = ssub.s32 %s15, 1
      $region12: #{tpu_custom_call.1} parent=5 // pred_fallthru
        _
      %p224 = scmp.lt.s32.totalorder %s15, 4
      // Predicated region
      $region13: #{tpu_custom_call.1} parent=5 // pred_check
        %p225 = pneg %p224
      $region14: #{tpu_custom_call.1} parent=5 // pred_check_branch
        %227 = sbr.rel (%p225) target = $region16
      $region15: #{tpu_custom_call.1} parent=5 // pred_region
        // Predicated region
        $region17: #{tpu_custom_call.1} parent=15 // pred_check
          %p228 = pneg %p47
        $region18: #{tpu_custom_call.1} parent=15 // pred_check_branch
          %230 = sbr.rel (%p228) target = $region20
        $region19: #{tpu_custom_call.1} parent=15 // pred_region
          %p231 = scmp.lt.s32.totalorder %s22, 1
          %s232 = scalar_select %p231, %s22, 1
          %s233 = smul.addr %s232, 2
          %s234 = smul.addr %s233, 8
          %s235 = scalar_lea.vmem %s0, %s234
        $region20: #{tpu_custom_call.1} parent=15 // pred_fallthru
          _
        // Predicated region
        $region21: #{tpu_custom_call.1} parent=15 // pred_check
          %p236 = pneg %p73
        $region22: #{tpu_custom_call.1} parent=15 // pred_check_branch
          %238 = sbr.rel (%p236) target = $region24
        $region23: #{tpu_custom_call.1} parent=15 // pred_region
          %p239 = scmp.lt.s32.totalorder %s23, 1
          %s240 = scalar_select %p239, %s23, 1
          %s241 = smul.addr %s240, 8
          %s242 = scalar_lea.vmem %s1, %s241
        $region24: #{tpu_custom_call.1} parent=15 // pred_fallthru
          _
        // Predicated region
        $region25: #{tpu_custom_call.1} parent=15 // pred_check
          %p243 = pneg %p99
        $region26: #{tpu_custom_call.1} parent=15 // pred_check_branch
          %245 = sbr.rel (%p243) target = $region28
        $region27: #{tpu_custom_call.1} parent=15 // pred_region
          %p246 = scmp.lt.s32.totalorder %s23, 1
          %s247 = scalar_select %p246, %s23, 1
          %s248 = smul.addr %s247, 32
          %s249 = smul.addr %s248, 4
          %s250 = scalar_lea.vmem %s2, %s249
        $region28: #{tpu_custom_call.1} parent=15 // pred_fallthru
          _
        // Predicated region
        $region29: #{tpu_custom_call.1} parent=15 // pred_check
          %p251 = pneg %p125
        $region30: #{tpu_custom_call.1} parent=15 // pred_check_branch
          %253 = sbr.rel (%p251) target = $region32
        $region31: #{tpu_custom_call.1} parent=15 // pred_region
          %p254 = scmp.lt.s32.totalorder %s23, 1
          %s255 = scalar_select %p254, %s23, 1
          %s256 = smul.addr %s255, 8
          %s257 = smul.addr %s256, 4
          %s258 = scalar_lea.vmem %s3, %s257
        $region32: #{tpu_custom_call.1} parent=15 // pred_fallthru
          _
        // Predicated region
        $region33: #{tpu_custom_call.1} parent=15 // pred_check
          %p259 = pneg %p151
        $region34: #{tpu_custom_call.1} parent=15 // pred_check_branch
          %261 = sbr.rel (%p259) target = $region36
        $region35: #{tpu_custom_call.1} parent=15 // pred_region
          %p262 = scmp.lt.s32.totalorder %s23, 1
          %s263 = scalar_select %p262, %s23, 1
          %s264 = smul.addr %s263, 16
          %s265 = smul.addr %s264, 4
          %s266 = scalar_lea.vmem %s4, %s265
        $region36: #{tpu_custom_call.1} parent=15 // pred_fallthru
          _
        // Predicated region
        $region37: #{tpu_custom_call.1} parent=15 // pred_check
          %p267 = pneg %p177
        $region38: #{tpu_custom_call.1} parent=15 // pred_check_branch
          %269 = sbr.rel (%p267) target = $region40
        $region39: #{tpu_custom_call.1} parent=15 // pred_region
          %p270 = scmp.lt.s32.totalorder %s23, 1
          %s271 = scalar_select %p270, %s23, 1
          %s272 = smul.addr %s271, 16
          %s273 = smul.addr %s272, 4
          %s274 = scalar_lea.vmem %s5, %s273
        $region40: #{tpu_custom_call.1} parent=15 // pred_fallthru
          _
      $region16: #{tpu_custom_call.1} parent=5 // pred_fallthru
        _
      %p275 = scmp.le.s32.totalorder 1, %s15
      %p276 = scmp.lt.s32.totalorder %s15, 5
      %p277 = pnand %p275, %p276
      %p278 = pneg %p277
      // Predicated region
      $region41: #{tpu_custom_call.1} parent=5 // pred_check
        _
      $region42: #{tpu_custom_call.1} parent=5 // pred_check_branch
        %280 = sbr.rel (%p277) target = $region44
      $region43: #{tpu_custom_call.1} parent=5 // pred_region
        %s281 = ssub.s32 %s15, 1
        %p282 = scmp.lt.s32.totalorder %s24, 1
        %s283 = scalar_select %p282, %s24, 1
        %s284 = smul.addr %s283, 2
        %s285 = smul.addr %s284, 8
        %s286 = scalar_lea.vmem %s0, %s285
        %p287 = pneg %p53
        %p288 = pneg %p50
        %p289 = scmp.lt.s32.totalorder %s25, 1
        %s290 = scalar_select %p289, %s25, 1
        %s291 = smul.addr %s290, 8
        %s292 = scalar_lea.vmem %s1, %s291
        %p293 = pneg %p79
        %p294 = pneg %p76
        %p295 = scmp.lt.s32.totalorder %s25, 1
        %s296 = scalar_select %p295, %s25, 1
        %s297 = smul.addr %s296, 32
        %s298 = smul.addr %s297, 4
        %s299 = scalar_lea.vmem %s2, %s298
        %p300 = pneg %p105
        %p301 = pneg %p102
        %p302 = scmp.lt.s32.totalorder %s25, 1
        %s303 = scalar_select %p302, %s25, 1
        %s304 = smul.addr %s303, 8
        %s305 = smul.addr %s304, 4
        %s306 = scalar_lea.vmem %s3, %s305
        %p307 = pneg %p131
        %p308 = pneg %p128
        %p309 = scmp.lt.s32.totalorder %s25, 1
        %s310 = scalar_select %p309, %s25, 1
        %s311 = smul.addr %s310, 16
        %s312 = smul.addr %s311, 4
        %s313 = scalar_lea.vmem %s4, %s312
        %p314 = pneg %p157
        %p315 = pneg %p154
        %p316 = scmp.lt.s32.totalorder %s25, 1
        %s317 = scalar_select %p316, %s25, 1
        %s318 = smul.addr %s317, 16
        %s319 = smul.addr %s318, 4
        %s320 = scalar_lea.vmem %s5, %s319
        %p321 = pneg %p183
        %p322 = pneg %p180
        %p323 = pneg %p209
        %p324 = pneg %p206
        %s325 = sand.u32 %s196, 1
        %s326 = scalar_lea.sflag [#allocation3], %s325
        %s327 = sand.u32 %s196, 1
        %s328 = smul.addr %s327, 16
        %s329 = scalar_lea.vmem [#allocation2], %s328
        %p330 = scmp.lt.s32.totalorder %s24, 1
        %s331 = scalar_select %p330, %s24, 1
        %s332 = smul.addr %s331, 2
        %s333 = smul.addr %s332, 8
        %s334 = scalar_lea.vmem %s0, %s333
        %p335 = scmp.lt.s32.totalorder %s25, 1
        %s336 = scalar_select %p335, %s25, 1
        %s337 = smul.addr %s336, 8
        %s338 = scalar_lea.vmem %s1, %s337
        %p339 = scmp.lt.s32.totalorder %s25, 1
        %s340 = scalar_select %p339, %s25, 1
        %s341 = smul.addr %s340, 32
        %s342 = smul.addr %s341, 4
        %s343 = scalar_lea.vmem %s2, %s342
        %p344 = scmp.lt.s32.totalorder %s25, 1
        %s345 = scalar_select %p344, %s25, 1
        %s346 = smul.addr %s345, 8
        %s347 = smul.addr %s346, 4
        %s348 = scalar_lea.vmem %s3, %s347
        %p349 = scmp.lt.s32.totalorder %s25, 1
        %s350 = scalar_select %p349, %s25, 1
        %s351 = smul.addr %s350, 16
        %s352 = smul.addr %s351, 4
        %s353 = scalar_lea.vmem %s4, %s352
        %p354 = scmp.lt.s32.totalorder %s25, 1
        %s355 = scalar_select %p354, %s25, 1
        %s356 = smul.addr %s355, 16
        %s357 = smul.addr %s356, 4
        %s358 = scalar_lea.vmem %s5, %s357
        %p360 = scmp.eq.s32.totalorder %s25, 0
        // Predicated region
        $region45: #{tpu_custom_call.1} parent=43 // pred_check
          %p361 = pneg %p360
        $region46: #{tpu_custom_call.1} parent=43 // pred_check_branch
          %363 = sbr.rel (%p361) target = $region48
        $region47: #{tpu_custom_call.1} parent=43 // pred_region
          %v364 = vld [vmem:[%s334] sm:$0xff]
          %v365 = vld [vmem:[%s334 + $0x8] sm:$0xff]
          %366 = vst [vmem:[%s329] sm:$0xff] %v364
          %367 = vst [vmem:[%s329 + $0x8] sm:$0xff] %v365
        $region48: #{tpu_custom_call.1} parent=43 // pred_fallthru
          _
        %v368 = vld [vmem:[%s329] sm:$0xff]
        %v369 = vld [vmem:[%s329 + $0x8] sm:$0xff]
        %v370 = vld [vmem:[%s338] sm:$0xff]
        %v371 = vlaneseq
        %v372 = vand.u32 %v371, 127
        %vm373 = vcmp.lt.s32.totalorder %v372, 32
        %vm374 = vcmp.lt.s32.totalorder %v372, 16
        %375 = vadd.xlane.f32.xlu0 %v368
        %v376 = vpop.xlane.xlu0 %375
        %377 = vadd.xlane.f32.xlu0 %v369
        %v378 = vpop.xlane.xlu0 %377
        %v379 = vmul.f32 %v376, 0.03125
        %v380 = vmul.f32 %v378, 0.03125
        %v381 = vsub.f32 %v368, %v379
        %v382 = vsub.f32 %v369, %v380
        %v383 = vsel %vm373, 1, 0
        %vm384 = vcmp.eq.s32.totalorder %v383, 1
        %v385 = vsel %vm384, %v381, 0.0
        %v386 = vsel %vm384, %v382, 0.0
        %v387 = vmul.f32 %v385, %v385
        %v388 = vmul.f32 %v386, %v386
        %389 = vadd.xlane.f32.xlu0 %v387
        %v390 = vpop.xlane.xlu0 %389
        %391 = vadd.xlane.f32.xlu0 %v388
        %v392 = vpop.xlane.xlu0 %391
        %v393 = vmul.f32 %v390, 0.03125
        %v394 = vmul.f32 %v392, 0.03125
        %v395 = vadd.f32 %v393, 1e-05
        %v396 = vadd.f32 %v394, 1e-05
        %v397 = vrsqrt.pop %v395
        %v398 = vrsqrt.pop %v396
        %v399 = vmul.f32 %v385, %v397
        %v400 = vmul.f32 %v386, %v398
        %v401 = vlaneseq
        %v402 = vshrl.u32 %v401, 7
        %v403 = vsub.s32 0, %v402
        %v404 = vrot.slane %v370, %v403
        %v405 = vmul.f32 %v399, %v404
        %v406 = vmul.f32 %v400, %v404
        %v407 = vlaneseq
        %v408 = vshrl.u32 %v407, 7
        %v409 = vsub.s32 1, %v408
        %v410 = vrot.slane %v370, %v409
        %v411 = vadd.f32 %v405, %v410
        %v412 = vadd.f32 %v406, %v410
        %v413 = vpack.c.bf16 %v412, %v411
        %v414 = vld [vmem:[%s343] sm:$0xff]
        %v415 = vld [vmem:[%s343 + $0x8] sm:$0xff]
        %v416 = vld [vmem:[%s343 + $0x10] sm:$0xff]
        %v417 = vld [vmem:[%s343 + $0x18] sm:$0xff]
        %v418 = vld [vmem:[%s343 + $0x20] sm:$0xff]
        %v419 = vld [vmem:[%s343 + $0x28] sm:$0xff]
        %v420 = vld [vmem:[%s343 + $0x30] sm:$0xff]
        %v421 = vld [vmem:[%s343 + $0x38] sm:$0xff]
        %v422 = vld [vmem:[%s343 + $0x40] sm:$0xff]
        %v423 = vld [vmem:[%s343 + $0x48] sm:$0xff]
        %v424 = vld [vmem:[%s343 + $0x50] sm:$0xff]
        %v425 = vld [vmem:[%s343 + $0x58] sm:$0xff]
        %v426 = vld [vmem:[%s343 + $0x60] sm:$0xff]
        %v427 = vld [vmem:[%s343 + $0x68] sm:$0xff]
        %v428 = vld [vmem:[%s343 + $0x70] sm:$0xff]
        %v429 = vld [vmem:[%s343 + $0x78] sm:$0xff]
        %v446 = vunpack.c.l.b16 %v414
        %v447 = vunpack.c.h.b16 %v414
        %v448 = vunpack.c.l.b16 %v415
        %v449 = vunpack.c.h.b16 %v415
        %v450 = vunpack.c.l.b16 %v416
        %v451 = vunpack.c.h.b16 %v416
        %v452 = vunpack.c.l.b16 %v417
        %v453 = vunpack.c.h.b16 %v417
        %v454 = vunpack.c.l.b16 %v418
        %v455 = vunpack.c.h.b16 %v418
        %v456 = vunpack.c.l.b16 %v419
        %v457 = vunpack.c.h.b16 %v419
        %v458 = vunpack.c.l.b16 %v420
        %v459 = vunpack.c.h.b16 %v420
        %v460 = vunpack.c.l.b16 %v421
        %v461 = vunpack.c.h.b16 %v421
        %v462 = vunpack.c.l.b16 %v422
        %v463 = vunpack.c.h.b16 %v422
        %v464 = vunpack.c.l.b16 %v423
        %v465 = vunpack.c.h.b16 %v423
        %v466 = vunpack.c.l.b16 %v424
        %v467 = vunpack.c.h.b16 %v424
        %v468 = vunpack.c.l.b16 %v425
        %v469 = vunpack.c.h.b16 %v425
        %v470 = vunpack.c.l.b16 %v426
        %v471 = vunpack.c.h.b16 %v426
        %v472 = vunpack.c.l.b16 %v427
        %v473 = vunpack.c.h.b16 %v427
        %v474 = vunpack.c.l.b16 %v428
        %v475 = vunpack.c.h.b16 %v428
        %v476 = vunpack.c.l.b16 %v429
        %v477 = vunpack.c.h.b16 %v429
        %v478 = vpack.c.b16 %v448, %v446
        %v479 = vpack.c.b16 %v449, %v447
        %v480 = vpack.c.b16 %v452, %v450
        %v481 = vpack.c.b16 %v453, %v451
        %v482 = vpack.c.b16 %v456, %v454
        %v483 = vpack.c.b16 %v457, %v455
        %v484 = vpack.c.b16 %v460, %v458
        %v485 = vpack.c.b16 %v461, %v459
        %v486 = vpack.c.b16 %v464, %v462
        %v487 = vpack.c.b16 %v465, %v463
        %v488 = vpack.c.b16 %v468, %v466
        %v489 = vpack.c.b16 %v469, %v467
        %v490 = vpack.c.b16 %v472, %v470
        %v491 = vpack.c.b16 %v473, %v471
        %v492 = vpack.c.b16 %v476, %v474
        %v493 = vpack.c.b16 %v477, %v475
        %510 = vmatprep.subr.bf16.mxu0 %v493
        %511 = vmatpush1.bf16.msra.mxu0 %v492
        %512 = vmatprep.subr.bf16.mxu0 %v491
        %513 = vmatpush1.bf16.msra.mxu0 %v490
        %514 = vmatprep.subr.bf16.mxu0 %v489
        %515 = vmatpush1.bf16.msra.mxu0 %v488
        %516 = vmatprep.subr.bf16.mxu0 %v487
        %517 = vmatpush1.bf16.msra.mxu0 %v486
        %518 = vmatprep.subr.bf16.mxu0 %v485
        %519 = vmatpush1.bf16.msra.mxu0 %v484
        %520 = vmatprep.subr.bf16.mxu0 %v483
        %521 = vmatpush1.bf16.msra.mxu0 %v482
        %522 = vmatprep.subr.bf16.mxu0 %v481
        %523 = vmatpush1.bf16.msra.mxu0 %v480
        %524 = vmatprep.subr.bf16.mxu0 %v479
        %525 = vmatpush1.bf16.msra.mxu0 %v478
        %526 = vmatprep.subr.bf16.mxu0 0
        %527 = vmatpush2.bf16.msra.mxu0 0
        %528 = vmatprep.subr.bf16.mxu0 0
        %529 = vmatpush2.bf16.msra.mxu0 0
        %530 = vmatprep.subr.bf16.mxu0 0
        %531 = vmatpush2.bf16.msra.mxu0 0
        %532 = vmatprep.subr.bf16.mxu0 0
        %533 = vmatpush2.bf16.msra.mxu0 0
        %534 = vmatprep.subr.bf16.mxu0 0
        %535 = vmatpush2.bf16.msra.mxu0 0
        %536 = vmatprep.subr.bf16.mxu0 0
        %537 = vmatpush2.bf16.msra.mxu0 0
        %538 = vmatprep.subr.bf16.mxu0 0
        %539 = vmatpush2.bf16.msra.mxu0 0
        %540 = vmatprep.subr.bf16.mxu0 0
        %541 = vmatpush2.bf16.msra.mxu0 0
        %542 = vmatprep.mubr.bf16.mxu0 0
        %543 = vmatmul.mubr.bf16.gmra.mxu0 %v413
        %v544 = vpop.f32.mrf.mxu0
        %v545 = vadd.f32 0.0, %v544
        %v546 = vpop.f32.mrf.mxu0
        %v547 = vadd.f32 0.0, %v546
        %v548 = vpop.f32.mrf.mxu0
        %v549 = vadd.f32 0.0, %v548
        %v550 = vpop.f32.mrf.mxu0
        %v551 = vadd.f32 0.0, %v550
        %552 = vdwg.mxu0
        %v553 = vpack.c.bf16 %v549, %v545
        %v554 = vpack.c.bf16 %v551, %v547
        %556 = vrot.lane.b32.xlu0 %v553, 64
        %v557 = vpop.permute.xlu0 %556
        %vm558 = vcmask 130048
        %v560 = vsel %vm558, %v553, 0
        %v563 = vsel %vm558, %v557, 0
        %565 = vmatprep.subr.bf16.mxu0 0
        %566 = vmatpush1.bf16.xpose.msra.mxu0 0
        %567 = vmatprep.subr.bf16.mxu0 0
        %568 = vmatpush1.bf16.xpose.msra.mxu0 0
        %569 = vmatprep.subr.bf16.mxu0 0
        %570 = vmatpush1.bf16.xpose.msra.mxu0 0
        %571 = vmatprep.subr.bf16.mxu0 0
        %572 = vmatpush1.bf16.xpose.msra.mxu0 0
        %573 = vmatprep.subr.bf16.mxu0 0
        %574 = vmatpush1.bf16.xpose.msra.mxu0 0
        %575 = vmatprep.subr.bf16.mxu0 0
        %576 = vmatpush1.bf16.xpose.msra.mxu0 0
        %577 = vmatprep.subr.bf16.mxu0 0
        %578 = vmatpush1.bf16.xpose.msra.mxu0 0
        %579 = vmatprep.subr.bf16.mxu0 0
        %580 = vmatpush1.bf16.xpose.msra.mxu0 %v563
        %581 = vmatprep.subr.bf16.mxu0 0
        %582 = vmatpush2.bf16.xpose.msra.mxu0 0
        %583 = vmatprep.subr.bf16.mxu0 0
        %584 = vmatpush2.bf16.xpose.msra.mxu0 0
        %585 = vmatprep.subr.bf16.mxu0 0
        %586 = vmatpush2.bf16.xpose.msra.mxu0 0
        %587 = vmatprep.subr.bf16.mxu0 0
        %588 = vmatpush2.bf16.xpose.msra.mxu0 0
        %589 = vmatprep.subr.bf16.mxu0 0
        %590 = vmatpush2.bf16.xpose.msra.mxu0 0
        %591 = vmatprep.subr.bf16.mxu0 0
        %592 = vmatpush2.bf16.xpose.msra.mxu0 0
        %593 = vmatprep.subr.bf16.mxu0 0
        %594 = vmatpush2.bf16.xpose.msra.mxu0 0
        %595 = vmatprep.subr.bf16.mxu0 0
        %596 = vmatpush2.bf16.xpose.msra.mxu0 0
        %597 = vmatprep.mubr.bf16.mxu0 0
        %598 = vmatmul.mubr.bf16.gmra.mxu0 %v560
        %v599 = vpop.f32.mrf.mxu0
        %v600 = vadd.f32 0.0, %v599
        %v601 = vpop.f32.mrf.mxu0
        %v602 = vpop.f32.mrf.mxu0
        %v603 = vadd.f32 0.0, %v602
        %v604 = vpop.f32.mrf.mxu0
        %605 = vdwg.mxu0
        %v606 = vsel %vm374, 1, 0
        %vm607 = vcmp.eq.s32.totalorder %v606, 1
        %v608 = vsel %vm607, %v600, -1e+30
        %v609 = vsel %vm607, %v603, -1e+30
        %v610 = vsel %vm558, %v608, -inf
        %611 = vmax.xlane.f32.xlu0 %v610
        %v612 = vpop.xlane.xlu0 %611
        %v613 = vsel %vm558, %v609, -inf
        %614 = vmax.xlane.f32.xlu0 %v613
        %v615 = vpop.xlane.xlu0 %614
        %v616 = vsub.f32 %v608, %v612
        %v617 = vsub.f32 %v609, %v615
        %v618 = vmul.f32 %v616, 1.442695
        %v619 = vpow.pop %v618
        %v620 = vmul.f32 %v617, 1.442695
        %v621 = vpow.pop %v620
        %v622 = vsel %vm558, %v619, 0.0
        %623 = vadd.xlane.f32.xlu0 %v622
        %v624 = vpop.xlane.xlu0 %623
        %v625 = vsel %vm558, %v621, 0.0
        %626 = vadd.xlane.f32.xlu0 %v625
        %v627 = vpop.xlane.xlu0 %626
        %v628 = vrcp.pop %v624
        %v629 = vrcp.pop %v627
        %v630 = vmul.f32 %v619, %v628
        %v631 = vmul.f32 %v621, %v629
        %v632 = vpack.c.bf16 %v631, %v630
        %v634 = vsel %vm558, %v632, 0
        %636 = vmatprep.subr.bf16.mxu0 0
        %637 = vmatpush1.bf16.msra.mxu0 0
        %638 = vmatprep.subr.bf16.mxu0 0
        %639 = vmatpush1.bf16.msra.mxu0 0
        %640 = vmatprep.subr.bf16.mxu0 0
        %641 = vmatpush1.bf16.msra.mxu0 0
        %642 = vmatprep.subr.bf16.mxu0 0
        %643 = vmatpush1.bf16.msra.mxu0 0
        %644 = vmatprep.subr.bf16.mxu0 0
        %645 = vmatpush1.bf16.msra.mxu0 0
        %646 = vmatprep.subr.bf16.mxu0 0
        %647 = vmatpush1.bf16.msra.mxu0 0
        %648 = vmatprep.subr.bf16.mxu0 0
        %649 = vmatpush1.bf16.msra.mxu0 0
        %650 = vmatprep.subr.bf16.mxu0 0
        %651 = vmatpush1.bf16.msra.mxu0 %v554
        %652 = vmatprep.subr.bf16.mxu0 0
        %653 = vmatpush2.bf16.msra.mxu0 0
        %654 = vmatprep.subr.bf16.mxu0 0
        %655 = vmatpush2.bf16.msra.mxu0 0
        %656 = vmatprep.subr.bf16.mxu0 0
        %657 = vmatpush2.bf16.msra.mxu0 0
        %658 = vmatprep.subr.bf16.mxu0 0
        %659 = vmatpush2.bf16.msra.mxu0 0
        %660 = vmatprep.subr.bf16.mxu0 0
        %661 = vmatpush2.bf16.msra.mxu0 0
        %662 = vmatprep.subr.bf16.mxu0 0
        %663 = vmatpush2.bf16.msra.mxu0 0
        %664 = vmatprep.subr.bf16.mxu0 0
        %665 = vmatpush2.bf16.msra.mxu0 0
        %666 = vmatprep.subr.bf16.mxu0 0
        %667 = vmatpush2.bf16.msra.mxu0 0
        %668 = vmatprep.mubr.bf16.mxu0 0
        %669 = vmatmul.mubr.bf16.gmra.mxu0 %v634
        %v670 = vpop.f32.mrf.mxu0
        %v671 = vadd.f32 0.0, %v670
        %v672 = vpop.f32.mrf.mxu0
        %v673 = vpop.f32.mrf.mxu0
        %v674 = vadd.f32 0.0, %v673
        %v675 = vpop.f32.mrf.mxu0
        %676 = vdwg.mxu0
        %677 = vrot.lane.b32.xlu0 %v553, 112
        %v678 = vpop.permute.xlu0 %677
        %679 = vrot.lane.b32.xlu0 %v553, 48
        %v680 = vpop.permute.xlu0 %679
        %v682 = vsel %vm558, %v678, 0
        %v685 = vsel %vm558, %v680, 0
        %687 = vmatprep.subr.bf16.mxu0 0
        %688 = vmatpush1.bf16.xpose.msra.mxu0 0
        %689 = vmatprep.subr.bf16.mxu0 0
        %690 = vmatpush1.bf16.xpose.msra.mxu0 0
        %691 = vmatprep.subr.bf16.mxu0 0
        %692 = vmatpush1.bf16.xpose.msra.mxu0 0
        %693 = vmatprep.subr.bf16.mxu0 0
        %694 = vmatpush1.bf16.xpose.msra.mxu0 0
        %695 = vmatprep.subr.bf16.mxu0 0
        %696 = vmatpush1.bf16.xpose.msra.mxu0 0
        %697 = vmatprep.subr.bf16.mxu0 0
        %698 = vmatpush1.bf16.xpose.msra.mxu0 0
        %699 = vmatprep.subr.bf16.mxu0 0
        %700 = vmatpush1.bf16.xpose.msra.mxu0 0
        %701 = vmatprep.subr.bf16.mxu0 0
        %702 = vmatpush1.bf16.xpose.msra.mxu0 %v685
        %703 = vmatprep.subr.bf16.mxu0 0
        %704 = vmatpush2.bf16.xpose.msra.mxu0 0
        %705 = vmatprep.subr.bf16.mxu0 0
        %706 = vmatpush2.bf16.xpose.msra.mxu0 0
        %707 = vmatprep.subr.bf16.mxu0 0
        %708 = vmatpush2.bf16.xpose.msra.mxu0 0
        %709 = vmatprep.subr.bf16.mxu0 0
        %710 = vmatpush2.bf16.xpose.msra.mxu0 0
        %711 = vmatprep.subr.bf16.mxu0 0
        %712 = vmatpush2.bf16.xpose.msra.mxu0 0
        %713 = vmatprep.subr.bf16.mxu0 0
        %714 = vmatpush2.bf16.xpose.msra.mxu0 0
        %715 = vmatprep.subr.bf16.mxu0 0
        %716 = vmatpush2.bf16.xpose.msra.mxu0 0
        %717 = vmatprep.subr.bf16.mxu0 0
        %718 = vmatpush2.bf16.xpose.msra.mxu0 0
        %719 = vmatprep.mubr.bf16.mxu0 0
        %720 = vmatmul.mubr.bf16.gmra.mxu0 %v682
        %v721 = vpop.f32.mrf.mxu0
        %v722 = vadd.f32 0.0, %v721
        %v723 = vpop.f32.mrf.mxu0
        %v724 = vpop.f32.mrf.mxu0
        %v725 = vadd.f32 0.0, %v724
        %v726 = vpop.f32.mrf.mxu0
        %727 = vdwg.mxu0
        %v728 = vsel %vm607, %v722, -1e+30
        %v729 = vsel %vm607, %v725, -1e+30
        %v730 = vsel %vm558, %v728, -inf
        %731 = vmax.xlane.f32.xlu0 %v730
        %v732 = vpop.xlane.xlu0 %731
        %v733 = vsel %vm558, %v729, -inf
        %734 = vmax.xlane.f32.xlu0 %v733
        %v735 = vpop.xlane.xlu0 %734
        %v736 = vsub.f32 %v728, %v732
        %v737 = vsub.f32 %v729, %v735
        %v738 = vmul.f32 %v736, 1.442695
        %v739 = vpow.pop %v738
        %v740 = vmul.f32 %v737, 1.442695
        %v741 = vpow.pop %v740
        %v742 = vsel %vm558, %v739, 0.0
        %743 = vadd.xlane.f32.xlu0 %v742
        %v744 = vpop.xlane.xlu0 %743
        %v745 = vsel %vm558, %v741, 0.0
        %746 = vadd.xlane.f32.xlu0 %v745
        %v747 = vpop.xlane.xlu0 %746
        %v748 = vrcp.pop %v744
        %v749 = vrcp.pop %v747
        %v750 = vmul.f32 %v739, %v748
        %v751 = vmul.f32 %v741, %v749
        %v752 = vpack.c.bf16 %v751, %v750
        %754 = vrot.lane.b32.xlu0 %v554, 112
        %v755 = vpop.permute.xlu0 %754
        %v758 = vsel %vm558, %v752, 0
        %760 = vmatprep.subr.bf16.mxu0 0
        %761 = vmatpush1.bf16.msra.mxu0 0
        %762 = vmatprep.subr.bf16.mxu0 0
        %763 = vmatpush1.bf16.msra.mxu0 0
        %764 = vmatprep.subr.bf16.mxu0 0
        %765 = vmatpush1.bf16.msra.mxu0 0
        %766 = vmatprep.subr.bf16.mxu0 0
        %767 = vmatpush1.bf16.msra.mxu0 0
        %768 = vmatprep.subr.bf16.mxu0 0
        %769 = vmatpush1.bf16.msra.mxu0 0
        %770 = vmatprep.subr.bf16.mxu0 0
        %771 = vmatpush1.bf16.msra.mxu0 0
        %772 = vmatprep.subr.bf16.mxu0 0
        %773 = vmatpush1.bf16.msra.mxu0 0
        %774 = vmatprep.subr.bf16.mxu0 0
        %775 = vmatpush1.bf16.msra.mxu0 %v755
        %776 = vmatprep.subr.bf16.mxu0 0
        %777 = vmatpush2.bf16.msra.mxu0 0
        %778 = vmatprep.subr.bf16.mxu0 0
        %779 = vmatpush2.bf16.msra.mxu0 0
        %780 = vmatprep.subr.bf16.mxu0 0
        %781 = vmatpush2.bf16.msra.mxu0 0
        %782 = vmatprep.subr.bf16.mxu0 0
        %783 = vmatpush2.bf16.msra.mxu0 0
        %784 = vmatprep.subr.bf16.mxu0 0
        %785 = vmatpush2.bf16.msra.mxu0 0
        %786 = vmatprep.subr.bf16.mxu0 0
        %787 = vmatpush2.bf16.msra.mxu0 0
        %788 = vmatprep.subr.bf16.mxu0 0
        %789 = vmatpush2.bf16.msra.mxu0 0
        %790 = vmatprep.subr.bf16.mxu0 0
        %791 = vmatpush2.bf16.msra.mxu0 0
        %792 = vmatprep.mubr.bf16.mxu0 0
        %793 = vmatmul.mubr.bf16.gmra.mxu0 %v758
        %v794 = vpop.f32.mrf.mxu0
        %v795 = vadd.f32 0.0, %v794
        %v796 = vpop.f32.mrf.mxu0
        %v797 = vpop.f32.mrf.mxu0
        %v798 = vadd.f32 0.0, %v797
        %v799 = vpop.f32.mrf.mxu0
        %800 = vdwg.mxu0
        %801 = vrot.lane.b32.xlu0 %v553, 96
        %v802 = vpop.permute.xlu0 %801
        %803 = vrot.lane.b32.xlu0 %v553, 32
        %v804 = vpop.permute.xlu0 %803
        %v806 = vsel %vm558, %v802, 0
        %v809 = vsel %vm558, %v804, 0
        %811 = vmatprep.subr.bf16.mxu0 0
        %812 = vmatpush1.bf16.xpose.msra.mxu0 0
        %813 = vmatprep.subr.bf16.mxu0 0
        %814 = vmatpush1.bf16.xpose.msra.mxu0 0
        %815 = vmatprep.subr.bf16.mxu0 0
        %816 = vmatpush1.bf16.xpose.msra.mxu0 0
        %817 = vmatprep.subr.bf16.mxu0 0
        %818 = vmatpush1.bf16.xpose.msra.mxu0 0
        %819 = vmatprep.subr.bf16.mxu0 0
        %820 = vmatpush1.bf16.xpose.msra.mxu0 0
        %821 = vmatprep.subr.bf16.mxu0 0
        %822 = vmatpush1.bf16.xpose.msra.mxu0 0
        %823 = vmatprep.subr.bf16.mxu0 0
        %824 = vmatpush1.bf16.xpose.msra.mxu0 0
        %825 = vmatprep.subr.bf16.mxu0 0
        %826 = vmatpush1.bf16.xpose.msra.mxu0 %v809
        %827 = vmatprep.subr.bf16.mxu0 0
        %828 = vmatpush2.bf16.xpose.msra.mxu0 0
        %829 = vmatprep.subr.bf16.mxu0 0
        %830 = vmatpush2.bf16.xpose.msra.mxu0 0
        %831 = vmatprep.subr.bf16.mxu0 0
        %832 = vmatpush2.bf16.xpose.msra.mxu0 0
        %833 = vmatprep.subr.bf16.mxu0 0
        %834 = vmatpush2.bf16.xpose.msra.mxu0 0
        %835 = vmatprep.subr.bf16.mxu0 0
        %836 = vmatpush2.bf16.xpose.msra.mxu0 0
        %837 = vmatprep.subr.bf16.mxu0 0
        %838 = vmatpush2.bf16.xpose.msra.mxu0 0
        %839 = vmatprep.subr.bf16.mxu0 0
        %840 = vmatpush2.bf16.xpose.msra.mxu0 0
        %841 = vmatprep.subr.bf16.mxu0 0
        %842 = vmatpush2.bf16.xpose.msra.mxu0 0
        %843 = vmatprep.mubr.bf16.mxu0 0
        %844 = vmatmul.mubr.bf16.gmra.mxu0 %v806
        %v845 = vpop.f32.mrf.mxu0
        %v846 = vadd.f32 0.0, %v845
        %v847 = vpop.f32.mrf.mxu0
        %v848 = vpop.f32.mrf.mxu0
        %v849 = vadd.f32 0.0, %v848
        %v850 = vpop.f32.mrf.mxu0
        %851 = vdwg.mxu0
        %v852 = vsel %vm607, %v846, -1e+30
        %v853 = vsel %vm607, %v849, -1e+30
        %v854 = vsel %vm558, %v852, -inf
        %855 = vmax.xlane.f32.xlu0 %v854
        %v856 = vpop.xlane.xlu0 %855
        %v857 = vsel %vm558, %v853, -inf
        %858 = vmax.xlane.f32.xlu0 %v857
        %v859 = vpop.xlane.xlu0 %858
        %v860 = vsub.f32 %v852, %v856
        %v861 = vsub.f32 %v853, %v859
        %v862 = vmul.f32 %v860, 1.442695
        %v863 = vpow.pop %v862
        %v864 = vmul.f32 %v861, 1.442695
        %v865 = vpow.pop %v864
        %v866 = vsel %vm558, %v863, 0.0
        %867 = vadd.xlane.f32.xlu0 %v866
        %v868 = vpop.xlane.xlu0 %867
        %v869 = vsel %vm558, %v865, 0.0
        %870 = vadd.xlane.f32.xlu0 %v869
        %v871 = vpop.xlane.xlu0 %870
        %v872 = vrcp.pop %v868
        %v873 = vrcp.pop %v871
        %v874 = vmul.f32 %v863, %v872
        %v875 = vmul.f32 %v865, %v873
        %v876 = vpack.c.bf16 %v875, %v874
        %877 = vrot.lane.b32.xlu0 %v554, 96
        %v878 = vpop.permute.xlu0 %877
        %v881 = vsel %vm558, %v876, 0
        %883 = vmatprep.subr.bf16.mxu0 0
        %884 = vmatpush1.bf16.msra.mxu0 0
        %885 = vmatprep.subr.bf16.mxu0 0
        %886 = vmatpush1.bf16.msra.mxu0 0
        %887 = vmatprep.subr.bf16.mxu0 0
        %888 = vmatpush1.bf16.msra.mxu0 0
        %889 = vmatprep.subr.bf16.mxu0 0
        %890 = vmatpush1.bf16.msra.mxu0 0
        %891 = vmatprep.subr.bf16.mxu0 0
        %892 = vmatpush1.bf16.msra.mxu0 0
        %893 = vmatprep.subr.bf16.mxu0 0
        %894 = vmatpush1.bf16.msra.mxu0 0
        %895 = vmatprep.subr.bf16.mxu0 0
        %896 = vmatpush1.bf16.msra.mxu0 0
        %897 = vmatprep.subr.bf16.mxu0 0
        %898 = vmatpush1.bf16.msra.mxu0 %v878
        %899 = vmatprep.subr.bf16.mxu0 0
        %900 = vmatpush2.bf16.msra.mxu0 0
        %901 = vmatprep.subr.bf16.mxu0 0
        %902 = vmatpush2.bf16.msra.mxu0 0
        %903 = vmatprep.subr.bf16.mxu0 0
        %904 = vmatpush2.bf16.msra.mxu0 0
        %905 = vmatprep.subr.bf16.mxu0 0
        %906 = vmatpush2.bf16.msra.mxu0 0
        %907 = vmatprep.subr.bf16.mxu0 0
        %908 = vmatpush2.bf16.msra.mxu0 0
        %909 = vmatprep.subr.bf16.mxu0 0
        %910 = vmatpush2.bf16.msra.mxu0 0
        %911 = vmatprep.subr.bf16.mxu0 0
        %912 = vmatpush2.bf16.msra.mxu0 0
        %913 = vmatprep.subr.bf16.mxu0 0
        %914 = vmatpush2.bf16.msra.mxu0 0
        %915 = vmatprep.mubr.bf16.mxu0 0
        %916 = vmatmul.mubr.bf16.gmra.mxu0 %v881
        %v917 = vpop.f32.mrf.mxu0
        %v918 = vadd.f32 0.0, %v917
        %v919 = vpop.f32.mrf.mxu0
        %v920 = vpop.f32.mrf.mxu0
        %v921 = vadd.f32 0.0, %v920
        %v922 = vpop.f32.mrf.mxu0
        %923 = vdwg.mxu0
        %924 = vrot.lane.b32.xlu0 %v553, 80
        %v925 = vpop.permute.xlu0 %924
        %926 = vrot.lane.b32.xlu0 %v553, 16
        %v927 = vpop.permute.xlu0 %926
        %v929 = vsel %vm558, %v925, 0
        %v932 = vsel %vm558, %v927, 0
        %934 = vmatprep.subr.bf16.mxu0 0
        %935 = vmatpush1.bf16.xpose.msra.mxu0 0
        %936 = vmatprep.subr.bf16.mxu0 0
        %937 = vmatpush1.bf16.xpose.msra.mxu0 0
        %938 = vmatprep.subr.bf16.mxu0 0
        %939 = vmatpush1.bf16.xpose.msra.mxu0 0
        %940 = vmatprep.subr.bf16.mxu0 0
        %941 = vmatpush1.bf16.xpose.msra.mxu0 0
        %942 = vmatprep.subr.bf16.mxu0 0
        %943 = vmatpush1.bf16.xpose.msra.mxu0 0
        %944 = vmatprep.subr.bf16.mxu0 0
        %945 = vmatpush1.bf16.xpose.msra.mxu0 0
        %946 = vmatprep.subr.bf16.mxu0 0
        %947 = vmatpush1.bf16.xpose.msra.mxu0 0
        %948 = vmatprep.subr.bf16.mxu0 0
        %949 = vmatpush1.bf16.xpose.msra.mxu0 %v932
        %950 = vmatprep.subr.bf16.mxu0 0
        %951 = vmatpush2.bf16.xpose.msra.mxu0 0
        %952 = vmatprep.subr.bf16.mxu0 0
        %953 = vmatpush2.bf16.xpose.msra.mxu0 0
        %954 = vmatprep.subr.bf16.mxu0 0
        %955 = vmatpush2.bf16.xpose.msra.mxu0 0
        %956 = vmatprep.subr.bf16.mxu0 0
        %957 = vmatpush2.bf16.xpose.msra.mxu0 0
        %958 = vmatprep.subr.bf16.mxu0 0
        %959 = vmatpush2.bf16.xpose.msra.mxu0 0
        %960 = vmatprep.subr.bf16.mxu0 0
        %961 = vmatpush2.bf16.xpose.msra.mxu0 0
        %962 = vmatprep.subr.bf16.mxu0 0
        %963 = vmatpush2.bf16.xpose.msra.mxu0 0
        %964 = vmatprep.subr.bf16.mxu0 0
        %965 = vmatpush2.bf16.xpose.msra.mxu0 0
        %966 = vmatprep.mubr.bf16.mxu0 0
        %967 = vmatmul.mubr.bf16.gmra.mxu0 %v929
        %v968 = vpop.f32.mrf.mxu0
        %v969 = vadd.f32 0.0, %v968
        %v970 = vpop.f32.mrf.mxu0
        %v971 = vpop.f32.mrf.mxu0
        %v972 = vadd.f32 0.0, %v971
        %v973 = vpop.f32.mrf.mxu0
        %974 = vdwg.mxu0
        %v975 = vsel %vm607, %v969, -1e+30
        %v976 = vsel %vm607, %v972, -1e+30
        %v977 = vsel %vm558, %v975, -inf
        %978 = vmax.xlane.f32.xlu0 %v977
        %v979 = vpop.xlane.xlu0 %978
        %v980 = vsel %vm558, %v976, -inf
        %981 = vmax.xlane.f32.xlu0 %v980
        %v982 = vpop.xlane.xlu0 %981
        %v983 = vsub.f32 %v975, %v979
        %v984 = vsub.f32 %v976, %v982
        %v985 = vmul.f32 %v983, 1.442695
        %v986 = vpow.pop %v985
        %v987 = vmul.f32 %v984, 1.442695
        %v988 = vpow.pop %v987
        %v989 = vsel %vm558, %v986, 0.0
        %990 = vadd.xlane.f32.xlu0 %v989
        %v991 = vpop.xlane.xlu0 %990
        %v992 = vsel %vm558, %v988, 0.0
        %993 = vadd.xlane.f32.xlu0 %v992
        %v994 = vpop.xlane.xlu0 %993
        %v995 = vrcp.pop %v991
        %v996 = vrcp.pop %v994
        %v997 = vmul.f32 %v986, %v995
        %v998 = vmul.f32 %v988, %v996
        %v999 = vpack.c.bf16 %v998, %v997
        %1000 = vrot.lane.b32.xlu0 %v554, 80
        %v1001 = vpop.permute.xlu0 %1000
        %v1004 = vsel %vm558, %v999, 0
        %1006 = vmatprep.subr.bf16.mxu0 0
        %1007 = vmatpush1.bf16.msra.mxu0 0
        %1008 = vmatprep.subr.bf16.mxu0 0
        %1009 = vmatpush1.bf16.msra.mxu0 0
        %1010 = vmatprep.subr.bf16.mxu0 0
        %1011 = vmatpush1.bf16.msra.mxu0 0
        %1012 = vmatprep.subr.bf16.mxu0 0
        %1013 = vmatpush1.bf16.msra.mxu0 0
        %1014 = vmatprep.subr.bf16.mxu0 0
        %1015 = vmatpush1.bf16.msra.mxu0 0
        %1016 = vmatprep.subr.bf16.mxu0 0
        %1017 = vmatpush1.bf16.msra.mxu0 0
        %1018 = vmatprep.subr.bf16.mxu0 0
        %1019 = vmatpush1.bf16.msra.mxu0 0
        %1020 = vmatprep.subr.bf16.mxu0 0
        %1021 = vmatpush1.bf16.msra.mxu0 %v1001
        %1022 = vmatprep.subr.bf16.mxu0 0
        %1023 = vmatpush2.bf16.msra.mxu0 0
        %1024 = vmatprep.subr.bf16.mxu0 0
        %1025 = vmatpush2.bf16.msra.mxu0 0
        %1026 = vmatprep.subr.bf16.mxu0 0
        %1027 = vmatpush2.bf16.msra.mxu0 0
        %1028 = vmatprep.subr.bf16.mxu0 0
        %1029 = vmatpush2.bf16.msra.mxu0 0
        %1030 = vmatprep.subr.bf16.mxu0 0
        %1031 = vmatpush2.bf16.msra.mxu0 0
        %1032 = vmatprep.subr.bf16.mxu0 0
        %1033 = vmatpush2.bf16.msra.mxu0 0
        %1034 = vmatprep.subr.bf16.mxu0 0
        %1035 = vmatpush2.bf16.msra.mxu0 0
        %1036 = vmatprep.subr.bf16.mxu0 0
        %1037 = vmatpush2.bf16.msra.mxu0 0
        %1038 = vmatprep.mubr.bf16.mxu0 0
        %1039 = vmatmul.mubr.bf16.gmra.mxu0 %v1004
        %v1040 = vpop.f32.mrf.mxu0
        %v1041 = vadd.f32 0.0, %v1040
        %v1042 = vpop.f32.mrf.mxu0
        %v1043 = vpop.f32.mrf.mxu0
        %v1044 = vadd.f32 0.0, %v1043
        %v1045 = vpop.f32.mrf.mxu0
        %1046 = vdwg.mxu0
        %1049 = vrot.lane.b32.xlu0 %v795, 16
        %v1050 = vpop.permute.xlu0 %1049
        %1051 = vrot.lane.b32.xlu0 %v798, 16
        %v1052 = vpop.permute.xlu0 %1051
        %1057 = vrot.lane.b32.xlu0 %v918, 32
        %v1058 = vpop.permute.xlu0 %1057
        %1059 = vrot.lane.b32.xlu0 %v921, 32
        %v1060 = vpop.permute.xlu0 %1059
        %1065 = vrot.lane.b32.xlu0 %v1041, 48
        %v1066 = vpop.permute.xlu0 %1065
        %1067 = vrot.lane.b32.xlu0 %v1044, 48
        %v1068 = vpop.permute.xlu0 %1067
        %v1071 = vsel %vm558, %v671, %v1050
        %v1072 = vsel %vm558, %v674, %v1052
        %vm1073 = vcmask 261120
        %v1074 = vsel %vm1073, %v1071, %v1058
        %v1075 = vsel %vm1073, %v1072, %v1060
        %vm1076 = vcmask 392192
        %v1077 = vsel %vm1076, %v1074, %v1066
        %v1078 = vsel %vm1076, %v1075, %v1068
        %v1079 = vpack.c.bf16 %v1078, %v1077
        %v1080 = vld [vmem:[%s348] sm:$0xf]
        %v1081 = vld [vmem:[%s348 + $0x4] sm:$0xf]
        %v1082 = vld [vmem:[%s348 + $0x8] sm:$0xf]
        %v1083 = vld [vmem:[%s348 + $0xc] sm:$0xf]
        %v1084 = vld [vmem:[%s348 + $0x10] sm:$0xf]
        %v1085 = vld [vmem:[%s348 + $0x14] sm:$0xf]
        %v1086 = vld [vmem:[%s348 + $0x18] sm:$0xf]
        %v1087 = vld [vmem:[%s348 + $0x1c] sm:$0xf]
        %v1096 = vunpack.c.l.b16 %v1080
        %v1097 = vunpack.c.l.b16 %v1081
        %v1098 = vunpack.c.l.b16 %v1082
        %v1099 = vunpack.c.l.b16 %v1083
        %v1100 = vunpack.c.l.b16 %v1084
        %v1101 = vunpack.c.l.b16 %v1085
        %v1102 = vunpack.c.l.b16 %v1086
        %v1103 = vunpack.c.l.b16 %v1087
        %v1104 = vpack.c.b16 %v1097, %v1096
        %v1105 = vpack.c.b16 %v1099, %v1098
        %v1106 = vpack.c.b16 %v1101, %v1100
        %v1107 = vpack.c.b16 %v1103, %v1102
        %vm1112 = vcmask 523264
        %v1114 = vsel %vm1112, %v1079, 0
        %1116 = vmatprep.subr.bf16.mxu0 0
        %1117 = vmatpush1.bf16.msra.mxu0 0
        %1118 = vmatprep.subr.bf16.mxu0 0
        %1119 = vmatpush1.bf16.msra.mxu0 0
        %1120 = vmatprep.subr.bf16.mxu0 0
        %1121 = vmatpush1.bf16.msra.mxu0 0
        %1122 = vmatprep.subr.bf16.mxu0 0
        %1123 = vmatpush1.bf16.msra.mxu0 0
        %1124 = vmatprep.subr.bf16.mxu0 0
        %1125 = vmatpush1.bf16.msra.mxu0 %v1107
        %1126 = vmatprep.subr.bf16.mxu0 0
        %1127 = vmatpush1.bf16.msra.mxu0 %v1106
        %1128 = vmatprep.subr.bf16.mxu0 0
        %1129 = vmatpush1.bf16.msra.mxu0 %v1105
        %1130 = vmatprep.subr.bf16.mxu0 0
        %1131 = vmatpush1.bf16.msra.mxu0 %v1104
        %1132 = vmatprep.subr.bf16.mxu0 0
        %1133 = vmatpush2.bf16.msra.mxu0 0
        %1134 = vmatprep.subr.bf16.mxu0 0
        %1135 = vmatpush2.bf16.msra.mxu0 0
        %1136 = vmatprep.subr.bf16.mxu0 0
        %1137 = vmatpush2.bf16.msra.mxu0 0
        %1138 = vmatprep.subr.bf16.mxu0 0
        %1139 = vmatpush2.bf16.msra.mxu0 0
        %1140 = vmatprep.subr.bf16.mxu0 0
        %1141 = vmatpush2.bf16.msra.mxu0 0
        %1142 = vmatprep.subr.bf16.mxu0 0
        %1143 = vmatpush2.bf16.msra.mxu0 0
        %1144 = vmatprep.subr.bf16.mxu0 0
        %1145 = vmatpush2.bf16.msra.mxu0 0
        %1146 = vmatprep.subr.bf16.mxu0 0
        %1147 = vmatpush2.bf16.msra.mxu0 0
        %1148 = vmatprep.mubr.bf16.mxu0 0
        %1149 = vmatmul.mubr.bf16.gmra.mxu0 %v1114
        %v1150 = vpop.f32.mrf.mxu0
        %v1151 = vadd.f32 0.0, %v1150
        %v1152 = vpop.f32.mrf.mxu0
        %v1153 = vpop.f32.mrf.mxu0
        %v1154 = vadd.f32 0.0, %v1153
        %v1155 = vpop.f32.mrf.mxu0
        %1156 = vdwg.mxu0
        %v1157 = vadd.f32 %v368, %v1151
        %v1158 = vadd.f32 %v369, %v1154
        %v1159 = vlaneseq
        %v1160 = vshrl.u32 %v1159, 7
        %v1161 = vsub.s32 2, %v1160
        %v1162 = vrot.slane %v370, %v1161
        %v1163 = vadd.f32 %v1157, %v1162
        %v1164 = vadd.f32 %v1158, %v1162
        %1165 = vadd.xlane.f32.xlu0 %v1163
        %v1166 = vpop.xlane.xlu0 %1165
        %1167 = vadd.xlane.f32.xlu0 %v1164
        %v1168 = vpop.xlane.xlu0 %1167
        %v1169 = vmul.f32 %v1166, 0.03125
        %v1170 = vmul.f32 %v1168, 0.03125
        %v1171 = vsub.f32 %v1163, %v1169
        %v1172 = vsub.f32 %v1164, %v1170
        %v1173 = vsel %vm384, %v1171, 0.0
        %v1174 = vsel %vm384, %v1172, 0.0
        %v1175 = vmul.f32 %v1173, %v1173
        %v1176 = vmul.f32 %v1174, %v1174
        %1177 = vadd.xlane.f32.xlu0 %v1175
        %v1178 = vpop.xlane.xlu0 %1177
        %1179 = vadd.xlane.f32.xlu0 %v1176
        %v1180 = vpop.xlane.xlu0 %1179
        %v1181 = vmul.f32 %v1178, 0.03125
        %v1182 = vmul.f32 %v1180, 0.03125
        %v1183 = vadd.f32 %v1181, 1e-05
        %v1184 = vadd.f32 %v1182, 1e-05
        %v1185 = vrsqrt.pop %v1183
        %v1186 = vrsqrt.pop %v1184
        %v1187 = vmul.f32 %v1173, %v1185
        %v1188 = vmul.f32 %v1174, %v1186
        %v1189 = vlaneseq
        %v1190 = vshrl.u32 %v1189, 7
        %v1191 = vsub.s32 3, %v1190
        %v1192 = vrot.slane %v370, %v1191
        %v1193 = vmul.f32 %v1187, %v1192
        %v1194 = vmul.f32 %v1188, %v1192
        %v1195 = vlaneseq
        %v1196 = vshrl.u32 %v1195, 7
        %v1197 = vsub.s32 4, %v1196
        %v1198 = vrot.slane %v370, %v1197
        %v1199 = vadd.f32 %v1193, %v1198
        %v1200 = vadd.f32 %v1194, %v1198
        %v1201 = vpack.c.bf16 %v1200, %v1199
        %v1202 = vld [vmem:[%s353] sm:$0xf]
        %v1203 = vld [vmem:[%s353 + $0x4] sm:$0xf]
        %v1204 = vld [vmem:[%s353 + $0x8] sm:$0xf]
        %v1205 = vld [vmem:[%s353 + $0xc] sm:$0xf]
        %v1206 = vld [vmem:[%s353 + $0x10] sm:$0xf]
        %v1207 = vld [vmem:[%s353 + $0x14] sm:$0xf]
        %v1208 = vld [vmem:[%s353 + $0x18] sm:$0xf]
        %v1209 = vld [vmem:[%s353 + $0x1c] sm:$0xf]
        %v1210 = vld [vmem:[%s353 + $0x20] sm:$0xf]
        %v1211 = vld [vmem:[%s353 + $0x24] sm:$0xf]
        %v1212 = vld [vmem:[%s353 + $0x28] sm:$0xf]
        %v1213 = vld [vmem:[%s353 + $0x2c] sm:$0xf]
        %v1214 = vld [vmem:[%s353 + $0x30] sm:$0xf]
        %v1215 = vld [vmem:[%s353 + $0x34] sm:$0xf]
        %v1216 = vld [vmem:[%s353 + $0x38] sm:$0xf]
        %v1217 = vld [vmem:[%s353 + $0x3c] sm:$0xf]
        %v1218 = vlaneseq
        %v1219 = vshrl.u32 %v1218, 7
        %v1220 = vsub.s32 6, %v1219
        %v1221 = vrot.slane %v370, %v1220
        %v1238 = vunpack.c.l.b16 %v1202
        %v1239 = vunpack.c.l.b16 %v1203
        %v1240 = vunpack.c.l.b16 %v1204
        %v1241 = vunpack.c.l.b16 %v1205
        %v1242 = vunpack.c.l.b16 %v1206
        %v1243 = vunpack.c.l.b16 %v1207
        %v1244 = vunpack.c.l.b16 %v1208
        %v1245 = vunpack.c.l.b16 %v1209
        %v1246 = vunpack.c.l.b16 %v1210
        %v1247 = vunpack.c.l.b16 %v1211
        %v1248 = vunpack.c.l.b16 %v1212
        %v1249 = vunpack.c.l.b16 %v1213
        %v1250 = vunpack.c.l.b16 %v1214
        %v1251 = vunpack.c.l.b16 %v1215
        %v1252 = vunpack.c.l.b16 %v1216
        %v1253 = vunpack.c.l.b16 %v1217
        %v1254 = vpack.c.b16 %v1239, %v1238
        %v1255 = vpack.c.b16 %v1241, %v1240
        %v1256 = vpack.c.b16 %v1243, %v1242
        %v1257 = vpack.c.b16 %v1245, %v1244
        %v1258 = vpack.c.b16 %v1247, %v1246
        %v1259 = vpack.c.b16 %v1249, %v1248
        %v1260 = vpack.c.b16 %v1251, %v1250
        %v1261 = vpack.c.b16 %v1253, %v1252
        %1270 = vmatprep.subr.bf16.mxu0 0
        %1271 = vmatpush1.bf16.msra.mxu0 %v1261
        %1272 = vmatprep.subr.bf16.mxu0 0
        %1273 = vmatpush1.bf16.msra.mxu0 %v1260
        %1274 = vmatprep.subr.bf16.mxu0 0
        %1275 = vmatpush1.bf16.msra.mxu0 %v1259
        %1276 = vmatprep.subr.bf16.mxu0 0
        %1277 = vmatpush1.bf16.msra.mxu0 %v1258
        %1278 = vmatprep.subr.bf16.mxu0 0
        %1279 = vmatpush1.bf16.msra.mxu0 %v1257
        %1280 = vmatprep.subr.bf16.mxu0 0
        %1281 = vmatpush1.bf16.msra.mxu0 %v1256
        %1282 = vmatprep.subr.bf16.mxu0 0
        %1283 = vmatpush1.bf16.msra.mxu0 %v1255
        %1284 = vmatprep.subr.bf16.mxu0 0
        %1285 = vmatpush1.bf16.msra.mxu0 %v1254
        %1286 = vmatprep.subr.bf16.mxu0 0
        %1287 = vmatpush2.bf16.msra.mxu0 0
        %1288 = vmatprep.subr.bf16.mxu0 0
        %1289 = vmatpush2.bf16.msra.mxu0 0
        %1290 = vmatprep.subr.bf16.mxu0 0
        %1291 = vmatpush2.bf16.msra.mxu0 0
        %1292 = vmatprep.subr.bf16.mxu0 0
        %1293 = vmatpush2.bf16.msra.mxu0 0
        %1294 = vmatprep.subr.bf16.mxu0 0
        %1295 = vmatpush2.bf16.msra.mxu0 0
        %1296 = vmatprep.subr.bf16.mxu0 0
        %1297 = vmatpush2.bf16.msra.mxu0 0
        %1298 = vmatprep.subr.bf16.mxu0 0
        %1299 = vmatpush2.bf16.msra.mxu0 0
        %1300 = vmatprep.subr.bf16.mxu0 0
        %1301 = vmatpush2.bf16.msra.mxu0 0
        %1302 = vmatprep.mubr.bf16.mxu0 0
        %1303 = vmatmul.mubr.bf16.gmra.mxu0 %v1201
        %v1304 = vpop.f32.mrf.mxu0
        %v1305 = vadd.f32 %v1221, %v1304
        %v1306 = vpop.f32.mrf.mxu0
        %v1307 = vpop.f32.mrf.mxu0
        %v1308 = vadd.f32 %v1221, %v1307
        %v1309 = vpop.f32.mrf.mxu0
        %1310 = vdwg.mxu0
        %v1311 = vmul.f32 %v1305, 0.5
        %v1312 = vmul.f32 %v1308, 0.5
        %v1313 = vmul.f32 %v1305, 0.044715
        %v1314 = vmul.f32 %v1308, 0.044715
        %v1315 = vmul.f32 %v1313, %v1305
        %v1316 = vmul.f32 %v1314, %v1308
        %v1317 = vmul.f32 %v1315, %v1305
        %v1318 = vmul.f32 %v1316, %v1308
        %v1319 = vadd.f32 %v1305, %v1317
        %v1320 = vadd.f32 %v1308, %v1318
        %v1321 = vmul.f32 %v1319, 0.7978846
        %v1322 = vmul.f32 %v1320, 0.7978846
        %v1323 = vtanh.pop %v1321
        %v1324 = vtanh.pop %v1322
        %v1325 = vadd.f32 %v1323, 1.0
        %v1326 = vadd.f32 %v1324, 1.0
        %v1327 = vmul.f32 %v1311, %v1325
        %v1328 = vmul.f32 %v1312, %v1326
        %v1329 = vpack.c.bf16 %v1328, %v1327
        %v1330 = vld [vmem:[%s358] sm:$0xf]
        %v1331 = vld [vmem:[%s358 + $0x4] sm:$0xf]
        %v1332 = vld [vmem:[%s358 + $0x8] sm:$0xf]
        %v1333 = vld [vmem:[%s358 + $0xc] sm:$0xf]
        %v1334 = vld [vmem:[%s358 + $0x10] sm:$0xf]
        %v1335 = vld [vmem:[%s358 + $0x14] sm:$0xf]
        %v1336 = vld [vmem:[%s358 + $0x18] sm:$0xf]
        %v1337 = vld [vmem:[%s358 + $0x1c] sm:$0xf]
        %v1338 = vld [vmem:[%s358 + $0x20] sm:$0xf]
        %v1339 = vld [vmem:[%s358 + $0x24] sm:$0xf]
        %v1340 = vld [vmem:[%s358 + $0x28] sm:$0xf]
        %v1341 = vld [vmem:[%s358 + $0x2c] sm:$0xf]
        %v1342 = vld [vmem:[%s358 + $0x30] sm:$0xf]
        %v1343 = vld [vmem:[%s358 + $0x34] sm:$0xf]
        %v1344 = vld [vmem:[%s358 + $0x38] sm:$0xf]
        %v1345 = vld [vmem:[%s358 + $0x3c] sm:$0xf]
        %v1346 = vlaneseq
        %v1347 = vshrl.u32 %v1346, 7
        %v1348 = vsub.s32 5, %v1347
        %v1349 = vrot.slane %v370, %v1348
        %v1366 = vunpack.c.l.b16 %v1330
        %v1367 = vunpack.c.l.b16 %v1331
        %v1368 = vunpack.c.l.b16 %v1332
        %v1369 = vunpack.c.l.b16 %v1333
        %v1370 = vunpack.c.l.b16 %v1334
        %v1371 = vunpack.c.l.b16 %v1335
        %v1372 = vunpack.c.l.b16 %v1336
        %v1373 = vunpack.c.l.b16 %v1337
        %v1374 = vunpack.c.l.b16 %v1338
        %v1375 = vunpack.c.l.b16 %v1339
        %v1376 = vunpack.c.l.b16 %v1340
        %v1377 = vunpack.c.l.b16 %v1341
        %v1378 = vunpack.c.l.b16 %v1342
        %v1379 = vunpack.c.l.b16 %v1343
        %v1380 = vunpack.c.l.b16 %v1344
        %v1381 = vunpack.c.l.b16 %v1345
        %v1382 = vpack.c.b16 %v1367, %v1366
        %v1383 = vpack.c.b16 %v1369, %v1368
        %v1384 = vpack.c.b16 %v1371, %v1370
        %v1385 = vpack.c.b16 %v1373, %v1372
        %v1386 = vpack.c.b16 %v1375, %v1374
        %v1387 = vpack.c.b16 %v1377, %v1376
        %v1388 = vpack.c.b16 %v1379, %v1378
        %v1389 = vpack.c.b16 %v1381, %v1380
        %1398 = vmatprep.subr.bf16.mxu0 0
        %1399 = vmatpush1.bf16.msra.mxu0 %v1389
        %1400 = vmatprep.subr.bf16.mxu0 0
        %1401 = vmatpush1.bf16.msra.mxu0 %v1388
        %1402 = vmatprep.subr.bf16.mxu0 0
        %1403 = vmatpush1.bf16.msra.mxu0 %v1387
        %1404 = vmatprep.subr.bf16.mxu0 0
        %1405 = vmatpush1.bf16.msra.mxu0 %v1386
        %1406 = vmatprep.subr.bf16.mxu0 0
        %1407 = vmatpush1.bf16.msra.mxu0 %v1385
        %1408 = vmatprep.subr.bf16.mxu0 0
        %1409 = vmatpush1.bf16.msra.mxu0 %v1384
        %1410 = vmatprep.subr.bf16.mxu0 0
        %1411 = vmatpush1.bf16.msra.mxu0 %v1383
        %1412 = vmatprep.subr.bf16.mxu0 0
        %1413 = vmatpush1.bf16.msra.mxu0 %v1382
        %1414 = vmatprep.subr.bf16.mxu0 0
        %1415 = vmatpush2.bf16.msra.mxu0 0
        %1416 = vmatprep.subr.bf16.mxu0 0
        %1417 = vmatpush2.bf16.msra.mxu0 0
        %1418 = vmatprep.subr.bf16.mxu0 0
        %1419 = vmatpush2.bf16.msra.mxu0 0
        %1420 = vmatprep.subr.bf16.mxu0 0
        %1421 = vmatpush2.bf16.msra.mxu0 0
        %1422 = vmatprep.subr.bf16.mxu0 0
        %1423 = vmatpush2.bf16.msra.mxu0 0
        %1424 = vmatprep.subr.bf16.mxu0 0
        %1425 = vmatpush2.bf16.msra.mxu0 0
        %1426 = vmatprep.subr.bf16.mxu0 0
        %1427 = vmatpush2.bf16.msra.mxu0 0
        %1428 = vmatprep.subr.bf16.mxu0 0
        %1429 = vmatpush2.bf16.msra.mxu0 0
        %1430 = vmatprep.mubr.bf16.mxu0 0
        %1431 = vmatmul.mubr.bf16.gmra.mxu0 %v1329
        %v1432 = vpop.f32.mrf.mxu0
        %v1433 = vadd.f32 %v1349, %v1432
        %v1434 = vpop.f32.mrf.mxu0
        %v1435 = vpop.f32.mrf.mxu0
        %v1436 = vadd.f32 %v1349, %v1435
        %v1437 = vpop.f32.mrf.mxu0
        %1438 = vdwg.mxu0
        %v1439 = vadd.f32 %v1163, %v1433
        %v1440 = vadd.f32 %v1164, %v1436
        %1441 = vst [vmem:[%s329] sm:$0xff] %v1439
        %1442 = vst [vmem:[%s329 + $0x8] sm:$0xff] %v1440
        %s1443 = sand.u32 %s196, 1
        %s1444 = scalar_lea.sflag [#allocation3], %s1443
        %s1445 = sand.u32 %s196, 1
        %s1446 = smul.addr %s1445, 16
        %s1447 = scalar_lea.vmem [#allocation2], %s1446
        // Predicated region
        $region49: #{tpu_custom_call.1} parent=43 // pred_check
          %p1448 = pneg %p206
        $region50: #{tpu_custom_call.1} parent=43 // pred_check_branch
          %1450 = sbr.rel (%p1448) target = $region52
        $region51: #{tpu_custom_call.1} parent=43 // pred_region
          %s1452 = ssub.s32 256, 256
          %1453 = vsyncadd %s1444, %s1452
          %s1454 = smul.addr %s24, 2
          %s1455 = smul.addr %s1454, 128
          %s1456 = scalar_lea.hbm %s6, %s1455
          %s1457 = sshll.u32 %s1447, 4
          %s1458 = int_to_ptr.vmem [resolvable:$true] %s1457
          %1463 = dma.vmem_to_hbm [thread:$0]  %s1458, 256, %s1456, %s1444, 128, 128, 8
        $region52: #{tpu_custom_call.1} parent=43 // pred_fallthru
          _
      $region44: #{tpu_custom_call.1} parent=5 // pred_fallthru
        _
      %p1464 = scmp.le.s32.totalorder 2, %s15
      // Predicated region
      $region53: #{tpu_custom_call.1} parent=5 // pred_check
        %p1465 = pneg %p1464
      $region54: #{tpu_custom_call.1} parent=5 // pred_check_branch
        %1467 = sbr.rel (%p1465) target = $region56
      $region55: #{tpu_custom_call.1} parent=5 // pred_region
        %s1468 = ssub.s32 %s15, 2
        // Predicated region
        $region57: #{tpu_custom_call.1} parent=55 // pred_check
          %p1469 = pneg %p212
        $region58: #{tpu_custom_call.1} parent=55 // pred_check_branch
          %1471 = sbr.rel (%p1469) target = $region60
        $region59: #{tpu_custom_call.1} parent=55 // pred_region
          %s1472 = sand.u32 %s197, 1
          %s1473 = scalar_lea.sflag [#allocation3], %s1472
          %s1474 = sand.u32 %s197, 1
          %s1475 = smul.addr %s1474, 16
          %s1476 = scalar_lea.vmem [#allocation2], %s1475
          %1477 = dma.done %s1473, 256
        $region60: #{tpu_custom_call.1} parent=55 // pred_fallthru
          _
      $region56: #{tpu_custom_call.1} parent=5 // pred_fallthru
        _
    $region6: #{tpu_custom_call.1} parent=1 // loop_footer
      %s19 = sadd.s32 1, %s15
    $region7: #{tpu_custom_call.1} parent=1 // loop_footer_branch
      %14 = sbr.rel target = $region3
    $region8: #{tpu_custom_call.1} parent=1 // loop_exit
      _
    %1478 = vsyncpa [#allocation3], 1
    %s1479 = scalar_lea.sflag [#allocation3], 1
    %1480 = vsyncpa %s1479, 1

</llo_original>
